<compile_context>
chip_gen: v5e
topology: v5e:2x2
jax: 0.10.0
libtpu: 0.0.40
codegen_flags: <defaults>
</compile_context>

<pallas_src>
import functools

import jax
import jax.numpy as jnp
from jax import lax
from jax.experimental import pallas as pl
from jax.experimental.pallas import tpu as pltpu


def _sub_batch_target():
    """Per-generation sub-batch target (~MXU M rows): 128 on v5e, 256 on v6e/v7x."""
    try:
        kind = jax.devices()[0].device_kind.lower()
    except Exception:
        return 256
    if "v5 lite" in kind or "v5e" in kind:
        return 128
    return 256


def _choose_tiling(batch, target):
    """Pick (sub_batch, padded_batch).

    sub_batch is a multiple of 8 (f32 sublanes), clamped to the padded batch so
    small batches are not mostly dummy sets, and chosen so the grid is even and
    >= 2 whenever there is enough work (v7x: two TensorCores split the parallel
    batch axis; odd grids leave a 2x load imbalance on the last step).
    """
    bp8 = ((batch + 7) // 8) * 8          # sublane-align the batch
    grid = max(1, -(-bp8 // target))       # minimum grid at the target tile size
    if bp8 > 8:
        grid = max(grid, 2)                # keep both v7x TensorCores busy...
        grid += grid % 2                   # ...with an even split
    sub_batch = ((-(-bp8 // grid) + 7) // 8) * 8
    return sub_batch, grid * sub_batch


def _set2vec_kernel(num_step_encoder,
                    x_ref, wg_ref, bg_ref, w1_ref, w2_ref, out_ref):
    SB, N, D = x_ref.shape

    # Hoist every weight Ref read and the W2 broadcast out of the step loop
    # (the loop is unrolled for small step counts and JAX does not CSE
    # broadcast_in_dim).
    Wg = wg_ref[...]                                    # (2D, 4D) fused gate weights
    bg = bg_ref[...]                                    # (1, 4D)  fused gate biases
    W1 = w1_ref[...]                                    # (D, D)
    w2_b = jnp.broadcast_to(w2_ref[...].reshape(1, 1, D), (SB, N, D))

    def attend(h):
        # energy = tanh(h @ W1 + x) @ W2 ; softmax over the set axis N; read.
        # The set tile is re-read from VMEM each step (vld is cheap) instead of
        # being held live in vregs across the unrolled loop.  The softmax
        # normalization is an exact division applied to the (SB, D) read.
        x = x_ref[...]                                              # (SB, N, D)
        q = jnp.dot(h, W1, preferred_element_type=jnp.float32)      # (SB, D)
        e = jnp.tanh(q[:, None, :] + x)                             # (SB, N, D)
        energy = jnp.sum(e * w2_b, axis=-1, keepdims=True)          # (SB, N, 1)
        m = jnp.max(energy, axis=1, keepdims=True)                  # (SB, 1, 1)
        p = jnp.exp(energy - m)                                     # unnormalized att
        num = jnp.sum(x * p, axis=1)                                # (SB, D)
        den = jnp.sum(p, axis=1)                                    # (SB, 1)
        return num / den                                            # exact softmax read

    def step(_, mem):
        # The output block holds the running [hidden | read] 2D state, so the
        # fused gate matmul reads it directly: one (SB, 2D) @ (2D, 4D) dot.
        hr = out_ref[...]                                           # (SB, 2D)
        z = jnp.dot(hr, Wg, preferred_element_type=jnp.float32) + bg   # (SB, 4D)
        sg = jax.nn.sigmoid(z[:, :3 * D])        # forget | input | output gates
        ct = jnp.tanh(z[:, 3 * D:])              # memory candidate
        mem = sg[:, :D] * mem + sg[:, D:2 * D] * ct
        h = sg[:, 2 * D:] * jnp.tanh(mem)        # new LSTM hidden (SB, D)
        r = attend(h)                            # attention read   (SB, D)
        out_ref[:, :D] = h                       # hidden = cat([hidden, read], 1)
        out_ref[:, D:] = r
        return mem

    out_ref[...] = jnp.zeros((SB, 2 * D), jnp.float32)   # hidden_0 = 0, read_0 = 0
    lax.fori_loop(0, num_step_encoder, step,
                  jnp.zeros((SB, D), jnp.float32),        # memory_0 = 0
                  unroll=num_step_encoder <= 4)


def set2vec_forward_batched(input_sets, params, num_step_encoder, sub_batch=None):
    """Batched Set2Vec forward: (B, N, D) -> (B, 2D)."""
    B, N, D = input_sets.shape
    if sub_batch is None:
        sub_batch, Bp = _choose_tiling(B, _sub_batch_target())
    else:
        sub_batch = max(8, ((sub_batch + 7) // 8) * 8)
        Bp = -(-B // sub_batch) * sub_batch

    x = input_sets.astype(jnp.float32)
    if Bp != B:
        x = jnp.pad(x, ((0, Bp - B), (0, 0), (0, 0)))   # dummy sets, sliced off below

    kernel = functools.partial(_set2vec_kernel, num_step_encoder)
    # VMEM note: at these shapes everything fits with huge headroom.  If D is
    # ever scaled up, cast Wg/W1 to bf16 (keep f32 accumulation / elementwise
    # math) and raise vmem_limit_bytes — and remember v7x has only 64 MiB
    # physical VMEM (32 MiB default scoped), i.e. roughly half the D threshold
    # of v5e/v6e before that fallback is needed.
    out = pl.pallas_call(
        kernel,
        out_shape=jax.ShapeDtypeStruct((Bp, 2 * D), jnp.float32),
        grid=(Bp // sub_batch,),
        in_specs=[
            pl.BlockSpec((sub_batch, N, D), lambda b: (b, 0, 0)),   # per-sub-batch set tile
            pl.BlockSpec((2 * D, 4 * D), lambda b: (0, 0)),         # fused gate weights
            pl.BlockSpec((1, 4 * D), lambda b: (0, 0)),             # fused gate biases
            pl.BlockSpec((D, D), lambda b: (0, 0)),                 # W1
            pl.BlockSpec((1, D), lambda b: (0, 0)),                 # W2 as a row vector
        ],
        out_specs=pl.BlockSpec((sub_batch, 2 * D), lambda b: (b, 0)),
        compiler_params=pltpu.CompilerParams(
            dimension_semantics=("parallel",)),   # v7x: 2 TensorCores split the batch axis
    )(x, params["Wg"], params["bg"], params["W1"], params["W2"].reshape(1, D))

    return out[:B]


def set2vec_forward(input_set, params, num_step_encoder):
    """PyTorch Set2Vec.forward equivalent: (N, D) -> (1, 2D)."""
    return set2vec_forward_batched(input_set[None], params, num_step_encoder)


def set2vec_reference(input_set, params, num_step_encoder):
    """Pure-JAX reference mirroring the PyTorch module (self-check only)."""
    D = input_set.shape[1]
    hi = jax.lax.Precision.HIGHEST
    Wg, bg, W1, W2 = params["Wg"], params["bg"], params["W1"], params["W2"]
    hidden = jnp.zeros((1, 2 * D), jnp.float32)
    memory = jnp.zeros((1, D), jnp.float32)
    for _ in range(num_step_encoder):
        z = jnp.dot(hidden, Wg, precision=hi) + bg
        ft = jax.nn.sigmoid(z[:, :D])
        it = jax.nn.sigmoid(z[:, D:2 * D])
        ot = jax.nn.sigmoid(z[:, 2 * D:3 * D])
        ct = jnp.tanh(z[:, 3 * D:])
        memory = ft * memory + it * ct
        h = ot * jnp.tanh(memory)
        energy = jnp.dot(jnp.tanh(jnp.dot(h, W1, precision=hi) + input_set),
                         W2, precision=hi)                       # (N, 1)
        att = jax.nn.softmax(energy, axis=0)
        read = jnp.sum(input_set * att, axis=0, keepdims=True)   # (1, D)
        hidden = jnp.concatenate([h, read], axis=1)              # (1, 2D)
    return hidden


def _xavier(key, shape):
    fan_in, fan_out = shape[-2], shape[-1]
    limit = (6.0 / (fan_in + fan_out)) ** 0.5
    return jax.random.uniform(key, shape, jnp.float32, -limit, limit)


def make_params(key, D):
    ks = jax.random.split(key, 6)
    # Four PyTorch Linear(2D, D) gate weights, stored right-multiply (i.e.
    # transposed) and fused along the output/lane axis in the order
    # [forget, input, output, memory]; biases are zero-init as in the spec.
    Wg = jnp.concatenate([_xavier(ks[i], (2 * D, D)) for i in range(4)], axis=1)
    return {
        "Wg": Wg,                                    # (2D, 4D)
        "bg": jnp.zeros((1, 4 * D), jnp.float32),    # fused gate biases
        "W1": _xavier(ks[4], (D, D)),
        "W2": _xavier(ks[5], (D, 1)),
    }


if __name__ == "__main__":
    key = jax.random.PRNGKey(0)
    N, D, num_step_encoder = 8, 32, 3
    k_params, k_x, k_xb = jax.random.split(key, 3)
    params = make_params(k_params, D)

    # Single set, matching the PyTorch module signature: (N, D) -> (1, 2D).
    input_set = jax.random.normal(k_x, (N, D), jnp.float32)
    out_single = set2vec_forward(input_set, params, num_step_encoder)

    # Batched independent sets: (B, N, D) -> (B, 2D).  B=20 exercises the
    # tiling heuristic (even grid of 2, sub_batch=16) and batch padding.
    B = 20
    input_sets = jax.random.normal(k_xb, (B, N, D), jnp.float32)
    out_batched = set2vec_forward_batched(input_sets, params, num_step_encoder)

    jax.block_until_ready((out_single, out_batched))
    assert out_single.shape == (1, 2 * D)
    assert out_batched.shape == (B, 2 * D)

    # Numerical parity against a pure-JAX reference of the PyTorch module.
    ref_single = set2vec_reference(input_set, params, num_step_encoder)
    ref_batched = jax.vmap(
        lambda s: set2vec_reference(s, params, num_step_encoder)[0])(input_sets)
    assert jnp.allclose(out_single, ref_single, atol=2e-3, rtol=2e-3)
    assert jnp.allclose(out_batched, ref_batched, atol=2e-3, rtol=2e-3)

    print("KERNEL_OK")
</pallas_src>

<mosaic_0001>
module attributes {stable_mosaic.version = 11 : i64} {
  func.func @_set2vec_kernel(%arg0: i32, %arg1: memref<8x8x32xf32, #tpu.memory_space<vmem>>, %arg2: memref<64x128xf32, #tpu.memory_space<vmem>>, %arg3: memref<1x128xf32, #tpu.memory_space<vmem>>, %arg4: memref<32x32xf32, #tpu.memory_space<vmem>>, %arg5: memref<1x32xf32, #tpu.memory_space<vmem>>, %arg6: memref<8x64xf32, #tpu.memory_space<vmem>>) attributes {dimension_semantics = [#tpu.dimension_semantics<parallel>], iteration_bounds = array<i64: 1>, scalar_prefetch = 0 : i64, scratch_operands = 0 : i64, tpu.core_type = #tpu.core_type<tc>, window_params = [{transform_indices = @transform_0, window_bounds = array<i64: 8, 8, 32>}, {pipeline_mode = #tpu.pipeline_mode<synchronous>, transform_indices = @transform_1, window_bounds = array<i64: 64, 128>}, {pipeline_mode = #tpu.pipeline_mode<synchronous>, transform_indices = @transform_2, window_bounds = array<i64: 1, 128>}, {pipeline_mode = #tpu.pipeline_mode<synchronous>, transform_indices = @transform_3, window_bounds = array<i64: 32, 32>}, {pipeline_mode = #tpu.pipeline_mode<synchronous>, transform_indices = @transform_4, window_bounds = array<i64: 1, 32>}, {transform_indices = @transform_5, window_bounds = array<i64: 8, 64>}]} {
    %c0 = arith.constant 0 : index
    %c0_0 = arith.constant 0 : index
    %0 = vector.load %arg2[%c0, %c0_0] : memref<64x128xf32, #tpu.memory_space<vmem>>, vector<64x128xf32>
    %c0_1 = arith.constant 0 : index
    %c0_2 = arith.constant 0 : index
    %1 = vector.load %arg3[%c0_1, %c0_2] : memref<1x128xf32, #tpu.memory_space<vmem>>, vector<1x128xf32>
    %c0_3 = arith.constant 0 : index
    %c0_4 = arith.constant 0 : index
    %2 = vector.load %arg4[%c0_3, %c0_4] : memref<32x32xf32, #tpu.memory_space<vmem>>, vector<32x32xf32>
    %c0_5 = arith.constant 0 : index
    %c0_6 = arith.constant 0 : index
    %3 = vector.load %arg5[%c0_5, %c0_6] : memref<1x32xf32, #tpu.memory_space<vmem>>, vector<1x32xf32>
    %4 = vector.shape_cast %3 : vector<1x32xf32> to vector<1x1x32xf32>
    %5 = vector.shape_cast %4 : vector<1x1x32xf32> to vector<1x1x32xf32>
    %6 = vector.broadcast %5 : vector<1x1x32xf32> to vector<8x8x32xf32>
    %cst = arith.constant 0.000000e+00 : f32
    %7 = vector.broadcast %cst : f32 to vector<8x64xf32>
    %c0_7 = arith.constant 0 : index
    %c0_8 = arith.constant 0 : index
    %8 = vector.load %arg6[%c0_7, %c0_8] : memref<8x64xf32, #tpu.memory_space<vmem>>, vector<8x64xf32>
    tpu.vector_store %arg6[%c0_7, %c0_8], %7 {strides = array<i32>} : memref<8x64xf32, #tpu.memory_space<vmem>>, vector<8x64xf32>,
    %cst_9 = arith.constant 0.000000e+00 : f32
    %9 = vector.broadcast %cst_9 : f32 to vector<8x32xf32>
    %c0_i32 = arith.constant 0 : i32
    %c0_10 = arith.constant 0 : index
    %c0_11 = arith.constant 0 : index
    %10 = vector.load %arg6[%c0_10, %c0_11] : memref<8x64xf32, #tpu.memory_space<vmem>>, vector<8x64xf32>
    %cst_12 = arith.constant dense<0.000000e+00> : vector<8x128xf32>
    %11 = tpu.matmul %10, %0, %cst_12 {dimension_numbers = #tpu.dot_dimension_numbers<[1], [0], [0], [1], [0, 0, 1, 1], [], []>} : vector<8x64xf32>, vector<64x128xf32>, vector<8x128xf32> -> vector<8x128xf32>
    %12 = vector.broadcast %1 : vector<1x128xf32> to vector<8x128xf32>
    %13 = arith.addf %11, %12 : vector<8x128xf32>
    %14 = vector.extract_strided_slice %13 {offsets = [0, 0], sizes = [8, 96], strides = [1, 1]} : vector<8x128xf32> to vector<8x96xf32>
    %15 = arith.negf %14 : vector<8x96xf32>
    %16 = math.exp %15 : vector<8x96xf32>
    %cst_13 = arith.constant 1.000000e+00 : f32
    %17 = vector.broadcast %cst_13 : f32 to vector<8x96xf32>
    %18 = arith.addf %17, %16 : vector<8x96xf32>
    %19 = arith.divf %17, %18 : vector<8x96xf32>
    %20 = vector.extract_strided_slice %13 {offsets = [0, 96], sizes = [8, 32], strides = [1, 1]} : vector<8x128xf32> to vector<8x32xf32>
    %21 = math.tanh %20 : vector<8x32xf32>
    %22 = vector.extract_strided_slice %19 {offsets = [0, 0], sizes = [8, 32], strides = [1, 1]} : vector<8x96xf32> to vector<8x32xf32>
    %23 = arith.mulf %22, %9 : vector<8x32xf32>
    %24 = vector.extract_strided_slice %19 {offsets = [0, 32], sizes = [8, 32], strides = [1, 1]} : vector<8x96xf32> to vector<8x32xf32>
    %25 = arith.mulf %24, %21 : vector<8x32xf32>
    %26 = arith.addf %23, %25 : vector<8x32xf32>
    %27 = vector.extract_strided_slice %19 {offsets = [0, 64], sizes = [8, 32], strides = [1, 1]} : vector<8x96xf32> to vector<8x32xf32>
    %28 = math.tanh %26 : vector<8x32xf32>
    %29 = arith.mulf %27, %28 : vector<8x32xf32>
    %c0_14 = arith.constant 0 : index
    %c0_15 = arith.constant 0 : index
    %c0_16 = arith.constant 0 : index
    %30 = vector.load %arg1[%c0_14, %c0_15, %c0_16] : memref<8x8x32xf32, #tpu.memory_space<vmem>>, vector<8x8x32xf32>
    %cst_17 = arith.constant dense<0.000000e+00> : vector<8x32xf32>
    %31 = tpu.matmul %29, %2, %cst_17 {dimension_numbers = #tpu.dot_dimension_numbers<[1], [0], [0], [1], [0, 0, 1, 1], [], []>} : vector<8x32xf32>, vector<32x32xf32>, vector<8x32xf32> -> vector<8x32xf32>
    %32 = vector.shape_cast %31 : vector<8x32xf32> to vector<8x1x32xf32>
    %33 = vector.broadcast %32 : vector<8x1x32xf32> to vector<8x8x32xf32>
    %34 = arith.addf %33, %30 : vector<8x8x32xf32>
    %35 = math.tanh %34 : vector<8x8x32xf32>
    %36 = arith.mulf %35, %6 : vector<8x8x32xf32>
    %cst_18 = arith.constant dense<0.000000e+00> : vector<8x8xf32>
    %37 = vector.multi_reduction <add>, %36, %cst_18 [2] : vector<8x8x32xf32> to vector<8x8xf32>
    %38 = vector.shape_cast %37 : vector<8x8xf32> to vector<8x8x1xf32>
    %cst_19 = arith.constant dense<0xFF800000> : vector<8x1xf32>
    %39 = vector.multi_reduction <maximumf>, %38, %cst_19 [1] : vector<8x8x1xf32> to vector<8x1xf32>
    %40 = vector.shape_cast %39 : vector<8x1xf32> to vector<8x1x1xf32>
    %41 = vector.broadcast %40 : vector<8x1x1xf32> to vector<8x8x1xf32>
    %42 = arith.subf %38, %41 : vector<8x8x1xf32>
    %43 = math.exp %42 : vector<8x8x1xf32>
    %44 = vector.broadcast %43 : vector<8x8x1xf32> to vector<8x8x32xf32>
    %45 = arith.mulf %30, %44 : vector<8x8x32xf32>
    %cst_20 = arith.constant dense<0.000000e+00> : vector<8x32xf32>
    %46 = vector.multi_reduction <add>, %45, %cst_20 [1] : vector<8x8x32xf32> to vector<8x32xf32>
    %cst_21 = arith.constant dense<0.000000e+00> : vector<8x1xf32>
    %47 = vector.multi_reduction <add>, %43, %cst_21 [1] : vector<8x8x1xf32> to vector<8x1xf32>
    %48 = vector.broadcast %47 : vector<8x1xf32> to vector<8x32xf32>
    %49 = arith.divf %46, %48 : vector<8x32xf32>
    %c0_22 = arith.constant 0 : index
    %c0_23 = arith.constant 0 : index
    %50 = vector.load %arg6[%c0_22, %c0_23] : memref<8x64xf32, #tpu.memory_space<vmem>>, vector<8x32xf32>
    tpu.vector_store %arg6[%c0_22, %c0_23], %29 {strides = array<i32>} : memref<8x64xf32, #tpu.memory_space<vmem>>, vector<8x32xf32>,
    %c0_24 = arith.constant 0 : index
    %c32 = arith.constant 32 : index
    %51 = vector.load %arg6[%c0_24, %c32] : memref<8x64xf32, #tpu.memory_space<vmem>>, vector<8x32xf32>
    tpu.vector_store %arg6[%c0_24, %c32], %49 {strides = array<i32>} : memref<8x64xf32, #tpu.memory_space<vmem>>, vector<8x32xf32>,
    %c1_i32 = arith.constant 1 : i32
    %c0_25 = arith.constant 0 : index
    %c0_26 = arith.constant 0 : index
    %52 = vector.load %arg6[%c0_25, %c0_26] : memref<8x64xf32, #tpu.memory_space<vmem>>, vector<8x64xf32>
    %cst_27 = arith.constant dense<0.000000e+00> : vector<8x128xf32>
    %53 = tpu.matmul %52, %0, %cst_27 {dimension_numbers = #tpu.dot_dimension_numbers<[1], [0], [0], [1], [0, 0, 1, 1], [], []>} : vector<8x64xf32>, vector<64x128xf32>, vector<8x128xf32> -> vector<8x128xf32>
    %54 = vector.broadcast %1 : vector<1x128xf32> to vector<8x128xf32>
    %55 = arith.addf %53, %54 : vector<8x128xf32>
    %56 = vector.extract_strided_slice %55 {offsets = [0, 0], sizes = [8, 96], strides = [1, 1]} : vector<8x128xf32> to vector<8x96xf32>
    %57 = arith.negf %56 : vector<8x96xf32>
    %58 = math.exp %57 : vector<8x96xf32>
    %cst_28 = arith.constant 1.000000e+00 : f32
    %59 = vector.broadcast %cst_28 : f32 to vector<8x96xf32>
    %60 = arith.addf %59, %58 : vector<8x96xf32>
    %61 = arith.divf %59, %60 : vector<8x96xf32>
    %62 = vector.extract_strided_slice %55 {offsets = [0, 96], sizes = [8, 32], strides = [1, 1]} : vector<8x128xf32> to vector<8x32xf32>
    %63 = math.tanh %62 : vector<8x32xf32>
    %64 = vector.extract_strided_slice %61 {offsets = [0, 0], sizes = [8, 32], strides = [1, 1]} : vector<8x96xf32> to vector<8x32xf32>
    %65 = arith.mulf %64, %26 : vector<8x32xf32>
    %66 = vector.extract_strided_slice %61 {offsets = [0, 32], sizes = [8, 32], strides = [1, 1]} : vector<8x96xf32> to vector<8x32xf32>
    %67 = arith.mulf %66, %63 : vector<8x32xf32>
    %68 = arith.addf %65, %67 : vector<8x32xf32>
    %69 = vector.extract_strided_slice %61 {offsets = [0, 64], sizes = [8, 32], strides = [1, 1]} : vector<8x96xf32> to vector<8x32xf32>
    %70 = math.tanh %68 : vector<8x32xf32>
    %71 = arith.mulf %69, %70 : vector<8x32xf32>
    %c0_29 = arith.constant 0 : index
    %c0_30 = arith.constant 0 : index
    %c0_31 = arith.constant 0 : index
    %72 = vector.load %arg1[%c0_29, %c0_30, %c0_31] : memref<8x8x32xf32, #tpu.memory_space<vmem>>, vector<8x8x32xf32>
    %cst_32 = arith.constant dense<0.000000e+00> : vector<8x32xf32>
    %73 = tpu.matmul %71, %2, %cst_32 {dimension_numbers = #tpu.dot_dimension_numbers<[1], [0], [0], [1], [0, 0, 1, 1], [], []>} : vector<8x32xf32>, vector<32x32xf32>, vector<8x32xf32> -> vector<8x32xf32>
    %74 = vector.shape_cast %73 : vector<8x32xf32> to vector<8x1x32xf32>
    %75 = vector.broadcast %74 : vector<8x1x32xf32> to vector<8x8x32xf32>
    %76 = arith.addf %75, %72 : vector<8x8x32xf32>
    %77 = math.tanh %76 : vector<8x8x32xf32>
    %78 = arith.mulf %77, %6 : vector<8x8x32xf32>
    %cst_33 = arith.constant dense<0.000000e+00> : vector<8x8xf32>
    %79 = vector.multi_reduction <add>, %78, %cst_33 [2] : vector<8x8x32xf32> to vector<8x8xf32>
    %80 = vector.shape_cast %79 : vector<8x8xf32> to vector<8x8x1xf32>
    %cst_34 = arith.constant dense<0xFF800000> : vector<8x1xf32>
    %81 = vector.multi_reduction <maximumf>, %80, %cst_34 [1] : vector<8x8x1xf32> to vector<8x1xf32>
    %82 = vector.shape_cast %81 : vector<8x1xf32> to vector<8x1x1xf32>
    %83 = vector.broadcast %82 : vector<8x1x1xf32> to vector<8x8x1xf32>
    %84 = arith.subf %80, %83 : vector<8x8x1xf32>
    %85 = math.exp %84 : vector<8x8x1xf32>
    %86 = vector.broadcast %85 : vector<8x8x1xf32> to vector<8x8x32xf32>
    %87 = arith.mulf %72, %86 : vector<8x8x32xf32>
    %cst_35 = arith.constant dense<0.000000e+00> : vector<8x32xf32>
    %88 = vector.multi_reduction <add>, %87, %cst_35 [1] : vector<8x8x32xf32> to vector<8x32xf32>
    %cst_36 = arith.constant dense<0.000000e+00> : vector<8x1xf32>
    %89 = vector.multi_reduction <add>, %85, %cst_36 [1] : vector<8x8x1xf32> to vector<8x1xf32>
    %90 = vector.broadcast %89 : vector<8x1xf32> to vector<8x32xf32>
    %91 = arith.divf %88, %90 : vector<8x32xf32>
    %c0_37 = arith.constant 0 : index
    %c0_38 = arith.constant 0 : index
    %92 = vector.load %arg6[%c0_37, %c0_38] : memref<8x64xf32, #tpu.memory_space<vmem>>, vector<8x32xf32>
    tpu.vector_store %arg6[%c0_37, %c0_38], %71 {strides = array<i32>} : memref<8x64xf32, #tpu.memory_space<vmem>>, vector<8x32xf32>,
    %c0_39 = arith.constant 0 : index
    %c32_40 = arith.constant 32 : index
    %93 = vector.load %arg6[%c0_39, %c32_40] : memref<8x64xf32, #tpu.memory_space<vmem>>, vector<8x32xf32>
    tpu.vector_store %arg6[%c0_39, %c32_40], %91 {strides = array<i32>} : memref<8x64xf32, #tpu.memory_space<vmem>>, vector<8x32xf32>,
    %c2_i32 = arith.constant 2 : i32
    %c0_41 = arith.constant 0 : index
    %c0_42 = arith.constant 0 : index
    %94 = vector.load %arg6[%c0_41, %c0_42] : memref<8x64xf32, #tpu.memory_space<vmem>>, vector<8x64xf32>
    %cst_43 = arith.constant dense<0.000000e+00> : vector<8x128xf32>
    %95 = tpu.matmul %94, %0, %cst_43 {dimension_numbers = #tpu.dot_dimension_numbers<[1], [0], [0], [1], [0, 0, 1, 1], [], []>} : vector<8x64xf32>, vector<64x128xf32>, vector<8x128xf32> -> vector<8x128xf32>
    %96 = vector.broadcast %1 : vector<1x128xf32> to vector<8x128xf32>
    %97 = arith.addf %95, %96 : vector<8x128xf32>
    %98 = vector.extract_strided_slice %97 {offsets = [0, 0], sizes = [8, 96], strides = [1, 1]} : vector<8x128xf32> to vector<8x96xf32>
    %99 = arith.negf %98 : vector<8x96xf32>
    %100 = math.exp %99 : vector<8x96xf32>
    %cst_44 = arith.constant 1.000000e+00 : f32
    %101 = vector.broadcast %cst_44 : f32 to vector<8x96xf32>
    %102 = arith.addf %101, %100 : vector<8x96xf32>
    %103 = arith.divf %101, %102 : vector<8x96xf32>
    %104 = vector.extract_strided_slice %97 {offsets = [0, 96], sizes = [8, 32], strides = [1, 1]} : vector<8x128xf32> to vector<8x32xf32>
    %105 = math.tanh %104 : vector<8x32xf32>
    %106 = vector.extract_strided_slice %103 {offsets = [0, 0], sizes = [8, 32], strides = [1, 1]} : vector<8x96xf32> to vector<8x32xf32>
    %107 = arith.mulf %106, %68 : vector<8x32xf32>
    %108 = vector.extract_strided_slice %103 {offsets = [0, 32], sizes = [8, 32], strides = [1, 1]} : vector<8x96xf32> to vector<8x32xf32>
    %109 = arith.mulf %108, %105 : vector<8x32xf32>
    %110 = arith.addf %107, %109 : vector<8x32xf32>
    %111 = vector.extract_strided_slice %103 {offsets = [0, 64], sizes = [8, 32], strides = [1, 1]} : vector<8x96xf32> to vector<8x32xf32>
    %112 = math.tanh %110 : vector<8x32xf32>
    %113 = arith.mulf %111, %112 : vector<8x32xf32>
    %c0_45 = arith.constant 0 : index
    %c0_46 = arith.constant 0 : index
    %c0_47 = arith.constant 0 : index
    %114 = vector.load %arg1[%c0_45, %c0_46, %c0_47] : memref<8x8x32xf32, #tpu.memory_space<vmem>>, vector<8x8x32xf32>
    %cst_48 = arith.constant dense<0.000000e+00> : vector<8x32xf32>
    %115 = tpu.matmul %113, %2, %cst_48 {dimension_numbers = #tpu.dot_dimension_numbers<[1], [0], [0], [1], [0, 0, 1, 1], [], []>} : vector<8x32xf32>, vector<32x32xf32>, vector<8x32xf32> -> vector<8x32xf32>
    %116 = vector.shape_cast %115 : vector<8x32xf32> to vector<8x1x32xf32>
    %117 = vector.broadcast %116 : vector<8x1x32xf32> to vector<8x8x32xf32>
    %118 = arith.addf %117, %114 : vector<8x8x32xf32>
    %119 = math.tanh %118 : vector<8x8x32xf32>
    %120 = arith.mulf %119, %6 : vector<8x8x32xf32>
    %cst_49 = arith.constant dense<0.000000e+00> : vector<8x8xf32>
    %121 = vector.multi_reduction <add>, %120, %cst_49 [2] : vector<8x8x32xf32> to vector<8x8xf32>
    %122 = vector.shape_cast %121 : vector<8x8xf32> to vector<8x8x1xf32>
    %cst_50 = arith.constant dense<0xFF800000> : vector<8x1xf32>
    %123 = vector.multi_reduction <maximumf>, %122, %cst_50 [1] : vector<8x8x1xf32> to vector<8x1xf32>
    %124 = vector.shape_cast %123 : vector<8x1xf32> to vector<8x1x1xf32>
    %125 = vector.broadcast %124 : vector<8x1x1xf32> to vector<8x8x1xf32>
    %126 = arith.subf %122, %125 : vector<8x8x1xf32>
    %127 = math.exp %126 : vector<8x8x1xf32>
    %128 = vector.broadcast %127 : vector<8x8x1xf32> to vector<8x8x32xf32>
    %129 = arith.mulf %114, %128 : vector<8x8x32xf32>
    %cst_51 = arith.constant dense<0.000000e+00> : vector<8x32xf32>
    %130 = vector.multi_reduction <add>, %129, %cst_51 [1] : vector<8x8x32xf32> to vector<8x32xf32>
    %cst_52 = arith.constant dense<0.000000e+00> : vector<8x1xf32>
    %131 = vector.multi_reduction <add>, %127, %cst_52 [1] : vector<8x8x1xf32> to vector<8x1xf32>
    %132 = vector.broadcast %131 : vector<8x1xf32> to vector<8x32xf32>
    %133 = arith.divf %130, %132 : vector<8x32xf32>
    %c0_53 = arith.constant 0 : index
    %c0_54 = arith.constant 0 : index
    %134 = vector.load %arg6[%c0_53, %c0_54] : memref<8x64xf32, #tpu.memory_space<vmem>>, vector<8x32xf32>
    tpu.vector_store %arg6[%c0_53, %c0_54], %113 {strides = array<i32>} : memref<8x64xf32, #tpu.memory_space<vmem>>, vector<8x32xf32>,
    %c0_55 = arith.constant 0 : index
    %c32_56 = arith.constant 32 : index
    %135 = vector.load %arg6[%c0_55, %c32_56] : memref<8x64xf32, #tpu.memory_space<vmem>>, vector<8x32xf32>
    tpu.vector_store %arg6[%c0_55, %c32_56], %133 {strides = array<i32>} : memref<8x64xf32, #tpu.memory_space<vmem>>, vector<8x32xf32>,
    return
  }
  func.func @transform_0(%arg0: i32) -> (i32, i32, i32) {
    %c0_i32 = arith.constant 0 : i32
    %c0_i32_0 = arith.constant 0 : i32
    %c0_i32_1 = arith.constant 0 : i32
    return %arg0, %c0_i32, %c0_i32_0 : i32, i32, i32
  }
  func.func @transform_1(%arg0: i32) -> (i32, i32) {
    %c0_i32 = arith.constant 0 : i32
    %c0_i32_0 = arith.constant 0 : i32
    %c0_i32_1 = arith.constant 0 : i32
    return %c0_i32, %c0_i32_0 : i32, i32
  }
  func.func @transform_2(%arg0: i32) -> (i32, i32) {
    %c0_i32 = arith.constant 0 : i32
    %c0_i32_0 = arith.constant 0 : i32
    %c0_i32_1 = arith.constant 0 : i32
    return %c0_i32, %c0_i32_0 : i32, i32
  }
  func.func @transform_3(%arg0: i32) -> (i32, i32) {
    %c0_i32 = arith.constant 0 : i32
    %c0_i32_0 = arith.constant 0 : i32
    %c0_i32_1 = arith.constant 0 : i32
    return %c0_i32, %c0_i32_0 : i32, i32
  }
  func.func @transform_4(%arg0: i32) -> (i32, i32) {
    %c0_i32 = arith.constant 0 : i32
    %c0_i32_0 = arith.constant 0 : i32
    %c0_i32_1 = arith.constant 0 : i32
    return %c0_i32, %c0_i32_0 : i32, i32
  }
  func.func @transform_5(%arg0: i32) -> (i32, i32) {
    %c0_i32 = arith.constant 0 : i32
    %c0_i32_0 = arith.constant 0 : i32
    return %arg0, %c0_i32 : i32, i32
  }
}

</mosaic_0001>

<llo_original>
// kernel: tpu_custom_call.1
$region0: #{tpu_custom_call.1}
  #allocation0 [shape = 'u32[]', space=smem, size = 0x4, offset = 0x4, fixed_abs, tag = 'smem constant byte address 0x4 - core index']
  #allocation1 [shape = 'u32[72,128]{1,0:T(1,128)}', space=vmem, size = 0x9000, scoped, tag = 'internal scratch']
  %s0 = inlined_call_operand.hbm [shape: f32[8,8,32], index: 0, kind: input, shape index: {}]
  %s1 = inlined_call_operand.hbm [shape: f32[64,128], index: 1, kind: input, shape index: {}]
  %s2 = inlined_call_operand.vmem [shape: f32[1,128], index: 2, kind: input, shape index: {}]
  %s3 = inlined_call_operand.hbm [shape: f32[32,32], index: 3, kind: input, shape index: {}]
  %s4 = inlined_call_operand.vmem [shape: f32[1,32], index: 4, kind: input, shape index: {}]
  %s5 = inlined_call_operand.hbm [shape: f32[8,64], index: 5, kind: output, shape index: {}]
  %s6 = sld [smem:[#allocation0]]
  $region42: #{tpu_custom_call.1} parent=0
    _
  %s8 = ssub.s32 1, %s6
  %s9 = scalar_select 0, %s8, %s6
  $region1: #{tpu_custom_call.1} parent=0
    #allocation2 [shape = 'u8[32768]{0}', space=vmem, size = 0x8000, scoped, tag = 'input window, operand 0, single buffered']
    #allocation3 [shape = 's32[1]{0}', space=sflag, size = 0x4, scoped, tag = 'scoped memory for tpu_custom_call.1']
    #allocation4 [shape = 's32[1]{0}', space=sflag, size = 0x4, scoped, tag = 'scoped memory for tpu_custom_call.1']
    #allocation5 [shape = 'u8[32768]{0}', space=vmem, size = 0x8000, scoped, tag = 'input window, operand 1, single buffered']
    #allocation6 [shape = 's32[1]{0}', space=sflag, size = 0x4, scoped, tag = 'scoped memory for tpu_custom_call.1']
    #allocation7 [shape = 'u8[16384]{0}', space=vmem, size = 0x4000, scoped, tag = 'input window, operand 3, single buffered']
    #allocation8 [shape = 'u8[4096]{0}', space=vmem, size = 0x1000, scoped, tag = 'output window, operand 0, single buffered']
    %10 = vsyncpa [#allocation3], 0
    %11 = vsyncpa [#allocation6], 0
    %12 = vsyncpa [#allocation4], 0
    // Predicated region
    $region2: #{tpu_custom_call.1} parent=1 // pred_check
      _
    $region3: #{tpu_custom_call.1} parent=1 // pred_check_branch
      %14 = sbr.rel (0) target = $region5
    $region4: #{tpu_custom_call.1} parent=1 // pred_region
      %16 = vsyncadd [#allocation3], 0
      %s17 = sshll.u32 %s0, 4
      %s18 = int_to_ptr.hbm [resolvable:$true] %s17
      %s19 = sshll.u32 [#allocation2], 4
      %s20 = int_to_ptr.vmem [resolvable:$true] %s19
      %25 = dma.hbm_to_vmem [thread:$0]  %s18, 1024, %s20, [#allocation3], 128, 128, 8
    $region5: #{tpu_custom_call.1} parent=1 // pred_fallthru
      _
    // Predicated region
    $region6: #{tpu_custom_call.1} parent=1 // pred_check
      _
    $region7: #{tpu_custom_call.1} parent=1 // pred_check_branch
      %27 = sbr.rel (0) target = $region9
    $region8: #{tpu_custom_call.1} parent=1 // pred_region
      %29 = vsyncadd [#allocation6], 0
      %s30 = sshll.u32 %s1, 4
      %s31 = int_to_ptr.hbm [resolvable:$true] %s30
      %s32 = sshll.u32 [#allocation5], 4
      %s33 = int_to_ptr.vmem [resolvable:$true] %s32
      %38 = dma.hbm_to_vmem [thread:$0]  %s31, 1024, %s33, [#allocation6], 128, 128, 8
    $region9: #{tpu_custom_call.1} parent=1 // pred_fallthru
      _
    // Predicated region
    $region10: #{tpu_custom_call.1} parent=1 // pred_check
      _
    $region11: #{tpu_custom_call.1} parent=1 // pred_check_branch
      %40 = sbr.rel (0) target = $region13
    $region12: #{tpu_custom_call.1} parent=1 // pred_region
      _
    $region13: #{tpu_custom_call.1} parent=1 // pred_fallthru
      _
    // Predicated region
    $region14: #{tpu_custom_call.1} parent=1 // pred_check
      _
    $region15: #{tpu_custom_call.1} parent=1 // pred_check_branch
      %42 = sbr.rel (0) target = $region17
    $region16: #{tpu_custom_call.1} parent=1 // pred_region
      %44 = vsyncadd [#allocation6], 0
      %s45 = sshll.u32 %s3, 4
      %s46 = int_to_ptr.hbm [resolvable:$true] %s45
      %s47 = sshll.u32 [#allocation7], 4
      %s48 = int_to_ptr.vmem [resolvable:$true] %s47
      %53 = dma.hbm_to_vmem [thread:$0]  %s46, 512, %s48, [#allocation6], 128, 128, 8
    $region17: #{tpu_custom_call.1} parent=1 // pred_fallthru
      _
    // Predicated region
    $region18: #{tpu_custom_call.1} parent=1 // pred_check
      _
    $region19: #{tpu_custom_call.1} parent=1 // pred_check_branch
      %55 = sbr.rel (0) target = $region21
    $region20: #{tpu_custom_call.1} parent=1 // pred_region
      _
    $region21: #{tpu_custom_call.1} parent=1 // pred_fallthru
      _
    // Predicated region
    $region22: #{tpu_custom_call.1} parent=1 // pred_check
      _
    $region23: #{tpu_custom_call.1} parent=1 // pred_check_branch
      %57 = sbr.rel (0) target = $region25
    $region24: #{tpu_custom_call.1} parent=1 // pred_region
      %59 = dma.done [#allocation3], 1024
    $region25: #{tpu_custom_call.1} parent=1 // pred_fallthru
      _
    // Predicated region
    $region26: #{tpu_custom_call.1} parent=1 // pred_check
      _
    $region27: #{tpu_custom_call.1} parent=1 // pred_check_branch
      %61 = sbr.rel (0) target = $region29
    $region28: #{tpu_custom_call.1} parent=1 // pred_region
      %63 = dma.done [#allocation6], 1024
    $region29: #{tpu_custom_call.1} parent=1 // pred_fallthru
      _
    // Predicated region
    $region30: #{tpu_custom_call.1} parent=1 // pred_check
      _
    $region31: #{tpu_custom_call.1} parent=1 // pred_check_branch
      %65 = sbr.rel (0) target = $region33
    $region32: #{tpu_custom_call.1} parent=1 // pred_region
      %67 = dma.done [#allocation6], 512
    $region33: #{tpu_custom_call.1} parent=1 // pred_fallthru
      _
    %v68 = vld [vmem:[#allocation5] sm:$0xff]
    %v69 = vld [vmem:[#allocation5 + $0x8] sm:$0xff]
    %v70 = vld [vmem:[#allocation5 + $0x10] sm:$0xff]
    %v71 = vld [vmem:[#allocation5 + $0x18] sm:$0xff]
    %v72 = vld [vmem:[#allocation5 + $0x20] sm:$0xff]
    %v73 = vld [vmem:[#allocation5 + $0x28] sm:$0xff]
    %v74 = vld [vmem:[#allocation5 + $0x30] sm:$0xff]
    %v75 = vld [vmem:[#allocation5 + $0x38] sm:$0xff]
    %v76 = vld [vmem:[%s2] sm:$0x1]
    %v77 = vld [vmem:[#allocation7] sm:$0xff]
    %v78 = vld [vmem:[#allocation7 + $0x8] sm:$0xff]
    %v79 = vld [vmem:[#allocation7 + $0x10] sm:$0xff]
    %v80 = vld [vmem:[#allocation7 + $0x18] sm:$0xff]
    %v81 = vld [vmem:[%s4] sm:$0x1]
    %v83 = vperm.slane %v81, 0
    %vm85 = vcmask 523264
    %86 = vst.msk [vmem:[#allocation8] sm:$0xff] %vm85, 0.0
    %v87 = vld [vmem:[#allocation8] sm:$0xff]
    %v89 = vperm.slane %v76, 0
    %v92 = vsel %vm85, %v87, 0
    %94 = vmatpush.msra.mxu0 0.0
    %95 = vmatpush.msra.mxu0 0.0
    %96 = vmatpush.msra.mxu0 0.0
    %97 = vmatpush.msra.mxu0 0.0
    %98 = vmatpush.msra.mxu0 0.0
    %99 = vmatpush.msra.mxu0 0.0
    %100 = vmatpush.msra.mxu0 0.0
    %101 = vmatpush.msra.mxu0 0.0
    %102 = vmatpush.msra.mxu0 %v75
    %103 = vmatpush.msra.mxu0 %v74
    %104 = vmatpush.msra.mxu0 %v73
    %105 = vmatpush.msra.mxu0 %v72
    %106 = vmatpush.msra.mxu0 %v71
    %107 = vmatpush.msra.mxu0 %v70
    %108 = vmatpush.msra.mxu0 %v69
    %109 = vmatpush.msra.mxu0 %v68
    %110 = vmatmul.f32.gmra.mxu0 %v92
    %v111 = vpop.f32.mrf.mxu0
    %v112 = vadd.f32 %v89, %v111
    %113 = vdwg.mxu0
    %v114 = vxor.u32 %v112, 2147483648
    %v115 = vmul.f32 %v114, 1.442695
    %v116 = vpow.pop %v115
    %v117 = vadd.f32 %v116, 1.0
    %v118 = vrcp.pop %v117
    %v119 = vmul.f32 %v117, %v118
    %v120 = vsub.f32 1.0, %v119
    %v121 = vmul.f32 %v118, %v120
    %v122 = vadd.f32 %v118, %v121
    %vm123 = vweird.f32 %v117
    %vm124 = vweird.f32 %v118
    %vm125 = vmor %vm123, %vm124
    %v126 = vsel %vm125, %v118, %v122
    %v127 = vand.u32 2147483647, %v117
    %vm128 = vcmp.eq.f32.partialorder %v127, 8.507059e+37
    %v129 = vand.u32 %v117, 2147483648
    %v130 = vor.u32 1.1754944e-38, %v129
    %v131 = vsel %vm128, %v130, %v126
    %v132 = vmul.f32 1.0, %v131
    %v133 = vtanh.pop %v112
    %v134 = vmul.f32 %v132, 0.0
    %136 = vrot.lane.b32.xlu0 %v133, 64
    %v137 = vpop.permute.xlu0 %136
    %v139 = vmul.f32 %v132, %v137
    %141 = vrot.lane.b32.xlu0 %v139, 96
    %v142 = vpop.permute.xlu0 %141
    %v144 = vadd.f32 %v134, %v142
    %v145 = vtanh.pop %v144
    %147 = vrot.lane.b32.xlu0 %v145, 64
    %v148 = vpop.permute.xlu0 %147
    %v150 = vmul.f32 %v132, %v148
    %v151 = vld [vmem:[#allocation2] sm:$0xff]
    %v152 = vld [vmem:[#allocation2 + $0x8] sm:$0xff]
    %v153 = vld [vmem:[#allocation2 + $0x10] sm:$0xff]
    %v154 = vld [vmem:[#allocation2 + $0x18] sm:$0xff]
    %v155 = vld [vmem:[#allocation2 + $0x20] sm:$0xff]
    %v156 = vld [vmem:[#allocation2 + $0x28] sm:$0xff]
    %v157 = vld [vmem:[#allocation2 + $0x30] sm:$0xff]
    %v158 = vld [vmem:[#allocation2 + $0x38] sm:$0xff]
    %160 = vrot.lane.b32.xlu0 %v150, 64
    %v161 = vpop.permute.xlu0 %160
    %vm162 = vcmask 261120
    %v163 = vsel %vm162, %v161, 0
    %165 = vmatpush.msra.mxu0 0.0
    %166 = vmatpush.msra.mxu0 0.0
    %167 = vmatpush.msra.mxu0 0.0
    %168 = vmatpush.msra.mxu0 0.0
    %169 = vmatpush.msra.mxu0 0.0
    %170 = vmatpush.msra.mxu0 0.0
    %171 = vmatpush.msra.mxu0 0.0
    %172 = vmatpush.msra.mxu0 0.0
    %173 = vmatpush.msra.mxu0 0.0
    %174 = vmatpush.msra.mxu0 0.0
    %175 = vmatpush.msra.mxu0 0.0
    %176 = vmatpush.msra.mxu0 0.0
    %177 = vmatpush.msra.mxu0 %v80
    %178 = vmatpush.msra.mxu0 %v79
    %179 = vmatpush.msra.mxu0 %v78
    %180 = vmatpush.msra.mxu0 %v77
    %181 = vmatmul.f32.gmra.mxu0 %v163
    %v182 = vpop.f32.mrf.mxu0
    %v183 = vadd.f32 0.0, %v182
    %184 = vdwg.mxu0
    %v186 = vrot.slane %v183, 1
    %v187 = vrot.slane %v183, 2
    %v188 = vrot.slane %v183, 3
    %v189 = vrot.slane %v183, 4
    %v190 = vrot.slane %v183, 5
    %v191 = vrot.slane %v183, 6
    %v192 = vrot.slane %v183, 7
    %v193 = vperm.slane %v183, 0
    %v194 = vperm.slane %v186, 0
    %v195 = vperm.slane %v187, 0
    %v196 = vperm.slane %v188, 0
    %v197 = vperm.slane %v189, 0
    %v198 = vperm.slane %v190, 0
    %v199 = vperm.slane %v191, 0
    %v200 = vperm.slane %v192, 0
    %v209 = vadd.f32 %v193, %v151
    %v210 = vadd.f32 %v194, %v152
    %v211 = vadd.f32 %v195, %v153
    %v212 = vadd.f32 %v196, %v154
    %v213 = vadd.f32 %v197, %v155
    %v214 = vadd.f32 %v198, %v156
    %v215 = vadd.f32 %v199, %v157
    %v216 = vadd.f32 %v200, %v158
    %v217 = vtanh.pop %v209
    %v218 = vtanh.pop %v210
    %v219 = vtanh.pop %v211
    %v220 = vtanh.pop %v212
    %v221 = vtanh.pop %v213
    %v222 = vtanh.pop %v214
    %v223 = vtanh.pop %v215
    %v224 = vtanh.pop %v216
    %v225 = vmul.f32 %v217, %v83
    %v226 = vmul.f32 %v218, %v83
    %v227 = vmul.f32 %v219, %v83
    %v228 = vmul.f32 %v220, %v83
    %v229 = vmul.f32 %v221, %v83
    %v230 = vmul.f32 %v222, %v83
    %v231 = vmul.f32 %v223, %v83
    %v232 = vmul.f32 %v224, %v83
    %v233 = vsel %vm162, %v225, 0.0
    %234 = vadd.xlane.f32.xlu0 %v233
    %v235 = vpop.xlane.xlu0 %234
    %v236 = vsel %vm162, %v226, 0.0
    %237 = vadd.xlane.f32.xlu0 %v236
    %v238 = vpop.xlane.xlu0 %237
    %v239 = vsel %vm162, %v227, 0.0
    %240 = vadd.xlane.f32.xlu0 %v239
    %v241 = vpop.xlane.xlu0 %240
    %v242 = vsel %vm162, %v228, 0.0
    %243 = vadd.xlane.f32.xlu0 %v242
    %v244 = vpop.xlane.xlu0 %243
    %v245 = vsel %vm162, %v229, 0.0
    %246 = vadd.xlane.f32.xlu0 %v245
    %v247 = vpop.xlane.xlu0 %246
    %v248 = vsel %vm162, %v230, 0.0
    %249 = vadd.xlane.f32.xlu0 %v248
    %v250 = vpop.xlane.xlu0 %249
    %v251 = vsel %vm162, %v231, 0.0
    %252 = vadd.xlane.f32.xlu0 %v251
    %v253 = vpop.xlane.xlu0 %252
    %v254 = vsel %vm162, %v232, 0.0
    %255 = vadd.xlane.f32.xlu0 %v254
    %v256 = vpop.xlane.xlu0 %255
    %v257 = vrot.slane %v235, 4
    %v258 = vmax.f32 %v235, %v257
    %v259 = vrot.slane %v258, 2
    %v260 = vmax.f32 %v258, %v259
    %v261 = vrot.slane %v260, 1
    %v262 = vmax.f32 %v260, %v261
    %v263 = vrot.slane %v238, 4
    %v264 = vmax.f32 %v238, %v263
    %v265 = vrot.slane %v264, 2
    %v266 = vmax.f32 %v264, %v265
    %v267 = vrot.slane %v266, 1
    %v268 = vmax.f32 %v266, %v267
    %v269 = vrot.slane %v241, 4
    %v270 = vmax.f32 %v241, %v269
    %v271 = vrot.slane %v270, 2
    %v272 = vmax.f32 %v270, %v271
    %v273 = vrot.slane %v272, 1
    %v274 = vmax.f32 %v272, %v273
    %v275 = vrot.slane %v244, 4
    %v276 = vmax.f32 %v244, %v275
    %v277 = vrot.slane %v276, 2
    %v278 = vmax.f32 %v276, %v277
    %v279 = vrot.slane %v278, 1
    %v280 = vmax.f32 %v278, %v279
    %v281 = vrot.slane %v247, 4
    %v282 = vmax.f32 %v247, %v281
    %v283 = vrot.slane %v282, 2
    %v284 = vmax.f32 %v282, %v283
    %v285 = vrot.slane %v284, 1
    %v286 = vmax.f32 %v284, %v285
    %v287 = vrot.slane %v250, 4
    %v288 = vmax.f32 %v250, %v287
    %v289 = vrot.slane %v288, 2
    %v290 = vmax.f32 %v288, %v289
    %v291 = vrot.slane %v290, 1
    %v292 = vmax.f32 %v290, %v291
    %v293 = vrot.slane %v253, 4
    %v294 = vmax.f32 %v253, %v293
    %v295 = vrot.slane %v294, 2
    %v296 = vmax.f32 %v294, %v295
    %v297 = vrot.slane %v296, 1
    %v298 = vmax.f32 %v296, %v297
    %v299 = vrot.slane %v256, 4
    %v300 = vmax.f32 %v256, %v299
    %v301 = vrot.slane %v300, 2
    %v302 = vmax.f32 %v300, %v301
    %v303 = vrot.slane %v302, 1
    %v304 = vmax.f32 %v302, %v303
    %v305 = vsub.f32 %v235, %v262
    %v306 = vsub.f32 %v238, %v268
    %v307 = vsub.f32 %v241, %v274
    %v308 = vsub.f32 %v244, %v280
    %v309 = vsub.f32 %v247, %v286
    %v310 = vsub.f32 %v250, %v292
    %v311 = vsub.f32 %v253, %v298
    %v312 = vsub.f32 %v256, %v304
    %v313 = vmul.f32 %v305, 1.442695
    %v314 = vpow.pop %v313
    %v315 = vmul.f32 %v306, 1.442695
    %v316 = vpow.pop %v315
    %v317 = vmul.f32 %v307, 1.442695
    %v318 = vpow.pop %v317
    %v319 = vmul.f32 %v308, 1.442695
    %v320 = vpow.pop %v319
    %v321 = vmul.f32 %v309, 1.442695
    %v322 = vpow.pop %v321
    %v323 = vmul.f32 %v310, 1.442695
    %v324 = vpow.pop %v323
    %v325 = vmul.f32 %v311, 1.442695
    %v326 = vpow.pop %v325
    %v327 = vmul.f32 %v312, 1.442695
    %v328 = vpow.pop %v327
    %v329 = vmul.f32 %v151, %v314
    %v330 = vmul.f32 %v152, %v316
    %v331 = vmul.f32 %v153, %v318
    %v332 = vmul.f32 %v154, %v320
    %v333 = vmul.f32 %v155, %v322
    %v334 = vmul.f32 %v156, %v324
    %v335 = vmul.f32 %v157, %v326
    %v336 = vmul.f32 %v158, %v328
    %v337 = vsel %vm162, %v329, 0.0
    %v338 = vrot.slane %v337, 4
    %v339 = vadd.f32 %v337, %v338
    %v340 = vrot.slane %v339, 2
    %v341 = vadd.f32 %v339, %v340
    %v342 = vrot.slane %v341, 1
    %v343 = vadd.f32 %v341, %v342
    %v344 = vsel %vm162, %v330, 0.0
    %v345 = vrot.slane %v344, 4
    %v346 = vadd.f32 %v344, %v345
    %v347 = vrot.slane %v346, 2
    %v348 = vadd.f32 %v346, %v347
    %v349 = vrot.slane %v348, 1
    %v350 = vadd.f32 %v348, %v349
    %v351 = vsel %vm162, %v331, 0.0
    %v352 = vrot.slane %v351, 4
    %v353 = vadd.f32 %v351, %v352
    %v354 = vrot.slane %v353, 2
    %v355 = vadd.f32 %v353, %v354
    %v356 = vrot.slane %v355, 1
    %v357 = vadd.f32 %v355, %v356
    %v358 = vsel %vm162, %v332, 0.0
    %v359 = vrot.slane %v358, 4
    %v360 = vadd.f32 %v358, %v359
    %v361 = vrot.slane %v360, 2
    %v362 = vadd.f32 %v360, %v361
    %v363 = vrot.slane %v362, 1
    %v364 = vadd.f32 %v362, %v363
    %v365 = vsel %vm162, %v333, 0.0
    %v366 = vrot.slane %v365, 4
    %v367 = vadd.f32 %v365, %v366
    %v368 = vrot.slane %v367, 2
    %v369 = vadd.f32 %v367, %v368
    %v370 = vrot.slane %v369, 1
    %v371 = vadd.f32 %v369, %v370
    %v372 = vsel %vm162, %v334, 0.0
    %v373 = vrot.slane %v372, 4
    %v374 = vadd.f32 %v372, %v373
    %v375 = vrot.slane %v374, 2
    %v376 = vadd.f32 %v374, %v375
    %v377 = vrot.slane %v376, 1
    %v378 = vadd.f32 %v376, %v377
    %v379 = vsel %vm162, %v335, 0.0
    %v380 = vrot.slane %v379, 4
    %v381 = vadd.f32 %v379, %v380
    %v382 = vrot.slane %v381, 2
    %v383 = vadd.f32 %v381, %v382
    %v384 = vrot.slane %v383, 1
    %v385 = vadd.f32 %v383, %v384
    %v386 = vsel %vm162, %v336, 0.0
    %v387 = vrot.slane %v386, 4
    %v388 = vadd.f32 %v386, %v387
    %v389 = vrot.slane %v388, 2
    %v390 = vadd.f32 %v388, %v389
    %v391 = vrot.slane %v390, 1
    %v392 = vadd.f32 %v390, %v391
    %v393 = vrot.slane %v314, 4
    %v394 = vadd.f32 %v314, %v393
    %v395 = vrot.slane %v394, 2
    %v396 = vadd.f32 %v394, %v395
    %v397 = vrot.slane %v396, 1
    %v398 = vadd.f32 %v396, %v397
    %v399 = vrot.slane %v316, 4
    %v400 = vadd.f32 %v316, %v399
    %v401 = vrot.slane %v400, 2
    %v402 = vadd.f32 %v400, %v401
    %v403 = vrot.slane %v402, 1
    %v404 = vadd.f32 %v402, %v403
    %v405 = vrot.slane %v318, 4
    %v406 = vadd.f32 %v318, %v405
    %v407 = vrot.slane %v406, 2
    %v408 = vadd.f32 %v406, %v407
    %v409 = vrot.slane %v408, 1
    %v410 = vadd.f32 %v408, %v409
    %v411 = vrot.slane %v320, 4
    %v412 = vadd.f32 %v320, %v411
    %v413 = vrot.slane %v412, 2
    %v414 = vadd.f32 %v412, %v413
    %v415 = vrot.slane %v414, 1
    %v416 = vadd.f32 %v414, %v415
    %v417 = vrot.slane %v322, 4
    %v418 = vadd.f32 %v322, %v417
    %v419 = vrot.slane %v418, 2
    %v420 = vadd.f32 %v418, %v419
    %v421 = vrot.slane %v420, 1
    %v422 = vadd.f32 %v420, %v421
    %v423 = vrot.slane %v324, 4
    %v424 = vadd.f32 %v324, %v423
    %v425 = vrot.slane %v424, 2
    %v426 = vadd.f32 %v424, %v425
    %v427 = vrot.slane %v426, 1
    %v428 = vadd.f32 %v426, %v427
    %v429 = vrot.slane %v326, 4
    %v430 = vadd.f32 %v326, %v429
    %v431 = vrot.slane %v430, 2
    %v432 = vadd.f32 %v430, %v431
    %v433 = vrot.slane %v432, 1
    %v434 = vadd.f32 %v432, %v433
    %v435 = vrot.slane %v328, 4
    %v436 = vadd.f32 %v328, %v435
    %v437 = vrot.slane %v436, 2
    %v438 = vadd.f32 %v436, %v437
    %v439 = vrot.slane %v438, 1
    %v440 = vadd.f32 %v438, %v439
    %v441 = vrcp.pop %v398
    %v442 = vmul.f32 %v398, %v441
    %v443 = vsub.f32 1.0, %v442
    %v444 = vmul.f32 %v441, %v443
    %v445 = vadd.f32 %v441, %v444
    %vm446 = vweird.f32 %v398
    %vm447 = vweird.f32 %v441
    %vm448 = vmor %vm446, %vm447
    %v449 = vsel %vm448, %v441, %v445
    %v450 = vand.u32 2147483647, %v398
    %vm451 = vcmp.eq.f32.partialorder %v450, 8.507059e+37
    %v452 = vand.u32 %v398, 2147483648
    %v453 = vor.u32 1.1754944e-38, %v452
    %v454 = vsel %vm451, %v453, %v449
    %v455 = vmul.f32 %v343, %v454
    %v456 = vrcp.pop %v404
    %v457 = vmul.f32 %v404, %v456
    %v458 = vsub.f32 1.0, %v457
    %v459 = vmul.f32 %v456, %v458
    %v460 = vadd.f32 %v456, %v459
    %vm461 = vweird.f32 %v404
    %vm462 = vweird.f32 %v456
    %vm463 = vmor %vm461, %vm462
    %v464 = vsel %vm463, %v456, %v460
    %v465 = vand.u32 2147483647, %v404
    %vm466 = vcmp.eq.f32.partialorder %v465, 8.507059e+37
    %v467 = vand.u32 %v404, 2147483648
    %v468 = vor.u32 1.1754944e-38, %v467
    %v469 = vsel %vm466, %v468, %v464
    %v470 = vmul.f32 %v350, %v469
    %v471 = vrcp.pop %v410
    %v472 = vmul.f32 %v410, %v471
    %v473 = vsub.f32 1.0, %v472
    %v474 = vmul.f32 %v471, %v473
    %v475 = vadd.f32 %v471, %v474
    %vm476 = vweird.f32 %v410
    %vm477 = vweird.f32 %v471
    %vm478 = vmor %vm476, %vm477
    %v479 = vsel %vm478, %v471, %v475
    %v480 = vand.u32 2147483647, %v410
    %vm481 = vcmp.eq.f32.partialorder %v480, 8.507059e+37
    %v482 = vand.u32 %v410, 2147483648
    %v483 = vor.u32 1.1754944e-38, %v482
    %v484 = vsel %vm481, %v483, %v479
    %v485 = vmul.f32 %v357, %v484
    %v486 = vrcp.pop %v416
    %v487 = vmul.f32 %v416, %v486
    %v488 = vsub.f32 1.0, %v487
    %v489 = vmul.f32 %v486, %v488
    %v490 = vadd.f32 %v486, %v489
    %vm491 = vweird.f32 %v416
    %vm492 = vweird.f32 %v486
    %vm493 = vmor %vm491, %vm492
    %v494 = vsel %vm493, %v486, %v490
    %v495 = vand.u32 2147483647, %v416
    %vm496 = vcmp.eq.f32.partialorder %v495, 8.507059e+37
    %v497 = vand.u32 %v416, 2147483648
    %v498 = vor.u32 1.1754944e-38, %v497
    %v499 = vsel %vm496, %v498, %v494
    %v500 = vmul.f32 %v364, %v499
    %v501 = vrcp.pop %v422
    %v502 = vmul.f32 %v422, %v501
    %v503 = vsub.f32 1.0, %v502
    %v504 = vmul.f32 %v501, %v503
    %v505 = vadd.f32 %v501, %v504
    %vm506 = vweird.f32 %v422
    %vm507 = vweird.f32 %v501
    %vm508 = vmor %vm506, %vm507
    %v509 = vsel %vm508, %v501, %v505
    %v510 = vand.u32 2147483647, %v422
    %vm511 = vcmp.eq.f32.partialorder %v510, 8.507059e+37
    %v512 = vand.u32 %v422, 2147483648
    %v513 = vor.u32 1.1754944e-38, %v512
    %v514 = vsel %vm511, %v513, %v509
    %v515 = vmul.f32 %v371, %v514
    %v516 = vrcp.pop %v428
    %v517 = vmul.f32 %v428, %v516
    %v518 = vsub.f32 1.0, %v517
    %v519 = vmul.f32 %v516, %v518
    %v520 = vadd.f32 %v516, %v519
    %vm521 = vweird.f32 %v428
    %vm522 = vweird.f32 %v516
    %vm523 = vmor %vm521, %vm522
    %v524 = vsel %vm523, %v516, %v520
    %v525 = vand.u32 2147483647, %v428
    %vm526 = vcmp.eq.f32.partialorder %v525, 8.507059e+37
    %v527 = vand.u32 %v428, 2147483648
    %v528 = vor.u32 1.1754944e-38, %v527
    %v529 = vsel %vm526, %v528, %v524
    %v530 = vmul.f32 %v378, %v529
    %v531 = vrcp.pop %v434
    %v532 = vmul.f32 %v434, %v531
    %v533 = vsub.f32 1.0, %v532
    %v534 = vmul.f32 %v531, %v533
    %v535 = vadd.f32 %v531, %v534
    %vm536 = vweird.f32 %v434
    %vm537 = vweird.f32 %v531
    %vm538 = vmor %vm536, %vm537
    %v539 = vsel %vm538, %v531, %v535
    %v540 = vand.u32 2147483647, %v434
    %vm541 = vcmp.eq.f32.partialorder %v540, 8.507059e+37
    %v542 = vand.u32 %v434, 2147483648
    %v543 = vor.u32 1.1754944e-38, %v542
    %v544 = vsel %vm541, %v543, %v539
    %v545 = vmul.f32 %v385, %v544
    %v546 = vrcp.pop %v440
    %v547 = vmul.f32 %v440, %v546
    %v548 = vsub.f32 1.0, %v547
    %v549 = vmul.f32 %v546, %v548
    %v550 = vadd.f32 %v546, %v549
    %vm551 = vweird.f32 %v440
    %vm552 = vweird.f32 %v546
    %vm553 = vmor %vm551, %vm552
    %v554 = vsel %vm553, %v546, %v550
    %v555 = vand.u32 2147483647, %v440
    %vm556 = vcmp.eq.f32.partialorder %v555, 8.507059e+37
    %v557 = vand.u32 %v440, 2147483648
    %v558 = vor.u32 1.1754944e-38, %v557
    %v559 = vsel %vm556, %v558, %v554
    %v560 = vmul.f32 %v392, %v559
    %562 = vst.msk [vmem:[#allocation8] sm:$0xff] %vm162, %v161
    %vm571 = vcmask 1041409
    %v572 = vsel %vm571, %v470, %v455
    %vm573 = vcmask 1042434
    %v574 = vsel %vm573, %v485, %v572
    %vm575 = vcmask 1043459
    %v576 = vsel %vm575, %v500, %v574
    %vm577 = vcmask 1044484
    %v578 = vsel %vm577, %v515, %v576
    %vm579 = vcmask 1045509
    %v580 = vsel %vm579, %v530, %v578
    %vm581 = vcmask 1046534
    %v582 = vsel %vm581, %v545, %v580
    %vm583 = vcmask 1047559
    %v584 = vsel %vm583, %v560, %v582
    %585 = vrot.lane.b32.xlu0 %v584, 32
    %v586 = vpop.permute.xlu0 %585
    %vm588 = vcmask 523520
    %589 = vst.msk [vmem:[#allocation8] sm:$0xff] %vm588, %v586
    %v590 = vld [vmem:[#allocation8] sm:$0xff]
    %v592 = vsel %vm85, %v590, 0
    %594 = vmatpush.msra.mxu0 0.0
    %595 = vmatpush.msra.mxu0 0.0
    %596 = vmatpush.msra.mxu0 0.0
    %597 = vmatpush.msra.mxu0 0.0
    %598 = vmatpush.msra.mxu0 0.0
    %599 = vmatpush.msra.mxu0 0.0
    %600 = vmatpush.msra.mxu0 0.0
    %601 = vmatpush.msra.mxu0 0.0
    %602 = vmatpush.msra.mxu0 %v75
    %603 = vmatpush.msra.mxu0 %v74
    %604 = vmatpush.msra.mxu0 %v73
    %605 = vmatpush.msra.mxu0 %v72
    %606 = vmatpush.msra.mxu0 %v71
    %607 = vmatpush.msra.mxu0 %v70
    %608 = vmatpush.msra.mxu0 %v69
    %609 = vmatpush.msra.mxu0 %v68
    %610 = vmatmul.f32.gmra.mxu0 %v592
    %v611 = vpop.f32.mrf.mxu0
    %v612 = vadd.f32 %v89, %v611
    %613 = vdwg.mxu0
    %v614 = vxor.u32 %v612, 2147483648
    %v615 = vmul.f32 %v614, 1.442695
    %v616 = vpow.pop %v615
    %v617 = vadd.f32 %v616, 1.0
    %v618 = vrcp.pop %v617
    %v619 = vmul.f32 %v617, %v618
    %v620 = vsub.f32 1.0, %v619
    %v621 = vmul.f32 %v618, %v620
    %v622 = vadd.f32 %v618, %v621
    %vm623 = vweird.f32 %v617
    %vm624 = vweird.f32 %v618
    %vm625 = vmor %vm623, %vm624
    %v626 = vsel %vm625, %v618, %v622
    %v627 = vand.u32 2147483647, %v617
    %vm628 = vcmp.eq.f32.partialorder %v627, 8.507059e+37
    %v629 = vand.u32 %v617, 2147483648
    %v630 = vor.u32 1.1754944e-38, %v629
    %v631 = vsel %vm628, %v630, %v626
    %v632 = vmul.f32 1.0, %v631
    %v633 = vtanh.pop %v612
    %v634 = vmul.f32 %v632, %v144
    %636 = vrot.lane.b32.xlu0 %v633, 64
    %v637 = vpop.permute.xlu0 %636
    %v639 = vmul.f32 %v632, %v637
    %641 = vrot.lane.b32.xlu0 %v639, 96
    %v642 = vpop.permute.xlu0 %641
    %v644 = vadd.f32 %v634, %v642
    %v645 = vtanh.pop %v644
    %647 = vrot.lane.b32.xlu0 %v645, 64
    %v648 = vpop.permute.xlu0 %647
    %v650 = vmul.f32 %v632, %v648
    %v651 = vld [vmem:[#allocation2] sm:$0xff]
    %v652 = vld [vmem:[#allocation2 + $0x8] sm:$0xff]
    %v653 = vld [vmem:[#allocation2 + $0x10] sm:$0xff]
    %v654 = vld [vmem:[#allocation2 + $0x18] sm:$0xff]
    %v655 = vld [vmem:[#allocation2 + $0x20] sm:$0xff]
    %v656 = vld [vmem:[#allocation2 + $0x28] sm:$0xff]
    %v657 = vld [vmem:[#allocation2 + $0x30] sm:$0xff]
    %v658 = vld [vmem:[#allocation2 + $0x38] sm:$0xff]
    %660 = vrot.lane.b32.xlu0 %v650, 64
    %v661 = vpop.permute.xlu0 %660
    %v662 = vsel %vm162, %v661, 0
    %664 = vmatpush.msra.mxu0 0.0
    %665 = vmatpush.msra.mxu0 0.0
    %666 = vmatpush.msra.mxu0 0.0
    %667 = vmatpush.msra.mxu0 0.0
    %668 = vmatpush.msra.mxu0 0.0
    %669 = vmatpush.msra.mxu0 0.0
    %670 = vmatpush.msra.mxu0 0.0
    %671 = vmatpush.msra.mxu0 0.0
    %672 = vmatpush.msra.mxu0 0.0
    %673 = vmatpush.msra.mxu0 0.0
    %674 = vmatpush.msra.mxu0 0.0
    %675 = vmatpush.msra.mxu0 0.0
    %676 = vmatpush.msra.mxu0 %v80
    %677 = vmatpush.msra.mxu0 %v79
    %678 = vmatpush.msra.mxu0 %v78
    %679 = vmatpush.msra.mxu0 %v77
    %680 = vmatmul.f32.gmra.mxu0 %v662
    %v681 = vpop.f32.mrf.mxu0
    %v682 = vadd.f32 0.0, %v681
    %683 = vdwg.mxu0
    %v685 = vrot.slane %v682, 1
    %v686 = vrot.slane %v682, 2
    %v687 = vrot.slane %v682, 3
    %v688 = vrot.slane %v682, 4
    %v689 = vrot.slane %v682, 5
    %v690 = vrot.slane %v682, 6
    %v691 = vrot.slane %v682, 7
    %v692 = vperm.slane %v682, 0
    %v693 = vperm.slane %v685, 0
    %v694 = vperm.slane %v686, 0
    %v695 = vperm.slane %v687, 0
    %v696 = vperm.slane %v688, 0
    %v697 = vperm.slane %v689, 0
    %v698 = vperm.slane %v690, 0
    %v699 = vperm.slane %v691, 0
    %v708 = vadd.f32 %v692, %v651
    %v709 = vadd.f32 %v693, %v652
    %v710 = vadd.f32 %v694, %v653
    %v711 = vadd.f32 %v695, %v654
    %v712 = vadd.f32 %v696, %v655
    %v713 = vadd.f32 %v697, %v656
    %v714 = vadd.f32 %v698, %v657
    %v715 = vadd.f32 %v699, %v658
    %v716 = vtanh.pop %v708
    %v717 = vtanh.pop %v709
    %v718 = vtanh.pop %v710
    %v719 = vtanh.pop %v711
    %v720 = vtanh.pop %v712
    %v721 = vtanh.pop %v713
    %v722 = vtanh.pop %v714
    %v723 = vtanh.pop %v715
    %v724 = vmul.f32 %v716, %v83
    %v725 = vmul.f32 %v717, %v83
    %v726 = vmul.f32 %v718, %v83
    %v727 = vmul.f32 %v719, %v83
    %v728 = vmul.f32 %v720, %v83
    %v729 = vmul.f32 %v721, %v83
    %v730 = vmul.f32 %v722, %v83
    %v731 = vmul.f32 %v723, %v83
    %v732 = vsel %vm162, %v724, 0.0
    %733 = vadd.xlane.f32.xlu0 %v732
    %v734 = vpop.xlane.xlu0 %733
    %v735 = vsel %vm162, %v725, 0.0
    %736 = vadd.xlane.f32.xlu0 %v735
    %v737 = vpop.xlane.xlu0 %736
    %v738 = vsel %vm162, %v726, 0.0
    %739 = vadd.xlane.f32.xlu0 %v738
    %v740 = vpop.xlane.xlu0 %739
    %v741 = vsel %vm162, %v727, 0.0
    %742 = vadd.xlane.f32.xlu0 %v741
    %v743 = vpop.xlane.xlu0 %742
    %v744 = vsel %vm162, %v728, 0.0
    %745 = vadd.xlane.f32.xlu0 %v744
    %v746 = vpop.xlane.xlu0 %745
    %v747 = vsel %vm162, %v729, 0.0
    %748 = vadd.xlane.f32.xlu0 %v747
    %v749 = vpop.xlane.xlu0 %748
    %v750 = vsel %vm162, %v730, 0.0
    %751 = vadd.xlane.f32.xlu0 %v750
    %v752 = vpop.xlane.xlu0 %751
    %v753 = vsel %vm162, %v731, 0.0
    %754 = vadd.xlane.f32.xlu0 %v753
    %v755 = vpop.xlane.xlu0 %754
    %v756 = vrot.slane %v734, 4
    %v757 = vmax.f32 %v734, %v756
    %v758 = vrot.slane %v757, 2
    %v759 = vmax.f32 %v757, %v758
    %v760 = vrot.slane %v759, 1
    %v761 = vmax.f32 %v759, %v760
    %v762 = vrot.slane %v737, 4
    %v763 = vmax.f32 %v737, %v762
    %v764 = vrot.slane %v763, 2
    %v765 = vmax.f32 %v763, %v764
    %v766 = vrot.slane %v765, 1
    %v767 = vmax.f32 %v765, %v766
    %v768 = vrot.slane %v740, 4
    %v769 = vmax.f32 %v740, %v768
    %v770 = vrot.slane %v769, 2
    %v771 = vmax.f32 %v769, %v770
    %v772 = vrot.slane %v771, 1
    %v773 = vmax.f32 %v771, %v772
    %v774 = vrot.slane %v743, 4
    %v775 = vmax.f32 %v743, %v774
    %v776 = vrot.slane %v775, 2
    %v777 = vmax.f32 %v775, %v776
    %v778 = vrot.slane %v777, 1
    %v779 = vmax.f32 %v777, %v778
    %v780 = vrot.slane %v746, 4
    %v781 = vmax.f32 %v746, %v780
    %v782 = vrot.slane %v781, 2
    %v783 = vmax.f32 %v781, %v782
    %v784 = vrot.slane %v783, 1
    %v785 = vmax.f32 %v783, %v784
    %v786 = vrot.slane %v749, 4
    %v787 = vmax.f32 %v749, %v786
    %v788 = vrot.slane %v787, 2
    %v789 = vmax.f32 %v787, %v788
    %v790 = vrot.slane %v789, 1
    %v791 = vmax.f32 %v789, %v790
    %v792 = vrot.slane %v752, 4
    %v793 = vmax.f32 %v752, %v792
    %v794 = vrot.slane %v793, 2
    %v795 = vmax.f32 %v793, %v794
    %v796 = vrot.slane %v795, 1
    %v797 = vmax.f32 %v795, %v796
    %v798 = vrot.slane %v755, 4
    %v799 = vmax.f32 %v755, %v798
    %v800 = vrot.slane %v799, 2
    %v801 = vmax.f32 %v799, %v800
    %v802 = vrot.slane %v801, 1
    %v803 = vmax.f32 %v801, %v802
    %v804 = vsub.f32 %v734, %v761
    %v805 = vsub.f32 %v737, %v767
    %v806 = vsub.f32 %v740, %v773
    %v807 = vsub.f32 %v743, %v779
    %v808 = vsub.f32 %v746, %v785
    %v809 = vsub.f32 %v749, %v791
    %v810 = vsub.f32 %v752, %v797
    %v811 = vsub.f32 %v755, %v803
    %v812 = vmul.f32 %v804, 1.442695
    %v813 = vpow.pop %v812
    %v814 = vmul.f32 %v805, 1.442695
    %v815 = vpow.pop %v814
    %v816 = vmul.f32 %v806, 1.442695
    %v817 = vpow.pop %v816
    %v818 = vmul.f32 %v807, 1.442695
    %v819 = vpow.pop %v818
    %v820 = vmul.f32 %v808, 1.442695
    %v821 = vpow.pop %v820
    %v822 = vmul.f32 %v809, 1.442695
    %v823 = vpow.pop %v822
    %v824 = vmul.f32 %v810, 1.442695
    %v825 = vpow.pop %v824
    %v826 = vmul.f32 %v811, 1.442695
    %v827 = vpow.pop %v826
    %v828 = vmul.f32 %v651, %v813
    %v829 = vmul.f32 %v652, %v815
    %v830 = vmul.f32 %v653, %v817
    %v831 = vmul.f32 %v654, %v819
    %v832 = vmul.f32 %v655, %v821
    %v833 = vmul.f32 %v656, %v823
    %v834 = vmul.f32 %v657, %v825
    %v835 = vmul.f32 %v658, %v827
    %v836 = vsel %vm162, %v828, 0.0
    %v837 = vrot.slane %v836, 4
    %v838 = vadd.f32 %v836, %v837
    %v839 = vrot.slane %v838, 2
    %v840 = vadd.f32 %v838, %v839
    %v841 = vrot.slane %v840, 1
    %v842 = vadd.f32 %v840, %v841
    %v843 = vsel %vm162, %v829, 0.0
    %v844 = vrot.slane %v843, 4
    %v845 = vadd.f32 %v843, %v844
    %v846 = vrot.slane %v845, 2
    %v847 = vadd.f32 %v845, %v846
    %v848 = vrot.slane %v847, 1
    %v849 = vadd.f32 %v847, %v848
    %v850 = vsel %vm162, %v830, 0.0
    %v851 = vrot.slane %v850, 4
    %v852 = vadd.f32 %v850, %v851
    %v853 = vrot.slane %v852, 2
    %v854 = vadd.f32 %v852, %v853
    %v855 = vrot.slane %v854, 1
    %v856 = vadd.f32 %v854, %v855
    %v857 = vsel %vm162, %v831, 0.0
    %v858 = vrot.slane %v857, 4
    %v859 = vadd.f32 %v857, %v858
    %v860 = vrot.slane %v859, 2
    %v861 = vadd.f32 %v859, %v860
    %v862 = vrot.slane %v861, 1
    %v863 = vadd.f32 %v861, %v862
    %v864 = vsel %vm162, %v832, 0.0
    %v865 = vrot.slane %v864, 4
    %v866 = vadd.f32 %v864, %v865
    %v867 = vrot.slane %v866, 2
    %v868 = vadd.f32 %v866, %v867
    %v869 = vrot.slane %v868, 1
    %v870 = vadd.f32 %v868, %v869
    %v871 = vsel %vm162, %v833, 0.0
    %v872 = vrot.slane %v871, 4
    %v873 = vadd.f32 %v871, %v872
    %v874 = vrot.slane %v873, 2
    %v875 = vadd.f32 %v873, %v874
    %v876 = vrot.slane %v875, 1
    %v877 = vadd.f32 %v875, %v876
    %v878 = vsel %vm162, %v834, 0.0
    %v879 = vrot.slane %v878, 4
    %v880 = vadd.f32 %v878, %v879
    %v881 = vrot.slane %v880, 2
    %v882 = vadd.f32 %v880, %v881
    %v883 = vrot.slane %v882, 1
    %v884 = vadd.f32 %v882, %v883
    %v885 = vsel %vm162, %v835, 0.0
    %v886 = vrot.slane %v885, 4
    %v887 = vadd.f32 %v885, %v886
    %v888 = vrot.slane %v887, 2
    %v889 = vadd.f32 %v887, %v888
    %v890 = vrot.slane %v889, 1
    %v891 = vadd.f32 %v889, %v890
    %v892 = vrot.slane %v813, 4
    %v893 = vadd.f32 %v813, %v892
    %v894 = vrot.slane %v893, 2
    %v895 = vadd.f32 %v893, %v894
    %v896 = vrot.slane %v895, 1
    %v897 = vadd.f32 %v895, %v896
    %v898 = vrot.slane %v815, 4
    %v899 = vadd.f32 %v815, %v898
    %v900 = vrot.slane %v899, 2
    %v901 = vadd.f32 %v899, %v900
    %v902 = vrot.slane %v901, 1
    %v903 = vadd.f32 %v901, %v902
    %v904 = vrot.slane %v817, 4
    %v905 = vadd.f32 %v817, %v904
    %v906 = vrot.slane %v905, 2
    %v907 = vadd.f32 %v905, %v906
    %v908 = vrot.slane %v907, 1
    %v909 = vadd.f32 %v907, %v908
    %v910 = vrot.slane %v819, 4
    %v911 = vadd.f32 %v819, %v910
    %v912 = vrot.slane %v911, 2
    %v913 = vadd.f32 %v911, %v912
    %v914 = vrot.slane %v913, 1
    %v915 = vadd.f32 %v913, %v914
    %v916 = vrot.slane %v821, 4
    %v917 = vadd.f32 %v821, %v916
    %v918 = vrot.slane %v917, 2
    %v919 = vadd.f32 %v917, %v918
    %v920 = vrot.slane %v919, 1
    %v921 = vadd.f32 %v919, %v920
    %v922 = vrot.slane %v823, 4
    %v923 = vadd.f32 %v823, %v922
    %v924 = vrot.slane %v923, 2
    %v925 = vadd.f32 %v923, %v924
    %v926 = vrot.slane %v925, 1
    %v927 = vadd.f32 %v925, %v926
    %v928 = vrot.slane %v825, 4
    %v929 = vadd.f32 %v825, %v928
    %v930 = vrot.slane %v929, 2
    %v931 = vadd.f32 %v929, %v930
    %v932 = vrot.slane %v931, 1
    %v933 = vadd.f32 %v931, %v932
    %v934 = vrot.slane %v827, 4
    %v935 = vadd.f32 %v827, %v934
    %v936 = vrot.slane %v935, 2
    %v937 = vadd.f32 %v935, %v936
    %v938 = vrot.slane %v937, 1
    %v939 = vadd.f32 %v937, %v938
    %v940 = vrcp.pop %v897
    %v941 = vmul.f32 %v897, %v940
    %v942 = vsub.f32 1.0, %v941
    %v943 = vmul.f32 %v940, %v942
    %v944 = vadd.f32 %v940, %v943
    %vm945 = vweird.f32 %v897
    %vm946 = vweird.f32 %v940
    %vm947 = vmor %vm945, %vm946
    %v948 = vsel %vm947, %v940, %v944
    %v949 = vand.u32 2147483647, %v897
    %vm950 = vcmp.eq.f32.partialorder %v949, 8.507059e+37
    %v951 = vand.u32 %v897, 2147483648
    %v952 = vor.u32 1.1754944e-38, %v951
    %v953 = vsel %vm950, %v952, %v948
    %v954 = vmul.f32 %v842, %v953
    %v955 = vrcp.pop %v903
    %v956 = vmul.f32 %v903, %v955
    %v957 = vsub.f32 1.0, %v956
    %v958 = vmul.f32 %v955, %v957
    %v959 = vadd.f32 %v955, %v958
    %vm960 = vweird.f32 %v903
    %vm961 = vweird.f32 %v955
    %vm962 = vmor %vm960, %vm961
    %v963 = vsel %vm962, %v955, %v959
    %v964 = vand.u32 2147483647, %v903
    %vm965 = vcmp.eq.f32.partialorder %v964, 8.507059e+37
    %v966 = vand.u32 %v903, 2147483648
    %v967 = vor.u32 1.1754944e-38, %v966
    %v968 = vsel %vm965, %v967, %v963
    %v969 = vmul.f32 %v849, %v968
    %v970 = vrcp.pop %v909
    %v971 = vmul.f32 %v909, %v970
    %v972 = vsub.f32 1.0, %v971
    %v973 = vmul.f32 %v970, %v972
    %v974 = vadd.f32 %v970, %v973
    %vm975 = vweird.f32 %v909
    %vm976 = vweird.f32 %v970
    %vm977 = vmor %vm975, %vm976
    %v978 = vsel %vm977, %v970, %v974
    %v979 = vand.u32 2147483647, %v909
    %vm980 = vcmp.eq.f32.partialorder %v979, 8.507059e+37
    %v981 = vand.u32 %v909, 2147483648
    %v982 = vor.u32 1.1754944e-38, %v981
    %v983 = vsel %vm980, %v982, %v978
    %v984 = vmul.f32 %v856, %v983
    %v985 = vrcp.pop %v915
    %v986 = vmul.f32 %v915, %v985
    %v987 = vsub.f32 1.0, %v986
    %v988 = vmul.f32 %v985, %v987
    %v989 = vadd.f32 %v985, %v988
    %vm990 = vweird.f32 %v915
    %vm991 = vweird.f32 %v985
    %vm992 = vmor %vm990, %vm991
    %v993 = vsel %vm992, %v985, %v989
    %v994 = vand.u32 2147483647, %v915
    %vm995 = vcmp.eq.f32.partialorder %v994, 8.507059e+37
    %v996 = vand.u32 %v915, 2147483648
    %v997 = vor.u32 1.1754944e-38, %v996
    %v998 = vsel %vm995, %v997, %v993
    %v999 = vmul.f32 %v863, %v998
    %v1000 = vrcp.pop %v921
    %v1001 = vmul.f32 %v921, %v1000
    %v1002 = vsub.f32 1.0, %v1001
    %v1003 = vmul.f32 %v1000, %v1002
    %v1004 = vadd.f32 %v1000, %v1003
    %vm1005 = vweird.f32 %v921
    %vm1006 = vweird.f32 %v1000
    %vm1007 = vmor %vm1005, %vm1006
    %v1008 = vsel %vm1007, %v1000, %v1004
    %v1009 = vand.u32 2147483647, %v921
    %vm1010 = vcmp.eq.f32.partialorder %v1009, 8.507059e+37
    %v1011 = vand.u32 %v921, 2147483648
    %v1012 = vor.u32 1.1754944e-38, %v1011
    %v1013 = vsel %vm1010, %v1012, %v1008
    %v1014 = vmul.f32 %v870, %v1013
    %v1015 = vrcp.pop %v927
    %v1016 = vmul.f32 %v927, %v1015
    %v1017 = vsub.f32 1.0, %v1016
    %v1018 = vmul.f32 %v1015, %v1017
    %v1019 = vadd.f32 %v1015, %v1018
    %vm1020 = vweird.f32 %v927
    %vm1021 = vweird.f32 %v1015
    %vm1022 = vmor %vm1020, %vm1021
    %v1023 = vsel %vm1022, %v1015, %v1019
    %v1024 = vand.u32 2147483647, %v927
    %vm1025 = vcmp.eq.f32.partialorder %v1024, 8.507059e+37
    %v1026 = vand.u32 %v927, 2147483648
    %v1027 = vor.u32 1.1754944e-38, %v1026
    %v1028 = vsel %vm1025, %v1027, %v1023
    %v1029 = vmul.f32 %v877, %v1028
    %v1030 = vrcp.pop %v933
    %v1031 = vmul.f32 %v933, %v1030
    %v1032 = vsub.f32 1.0, %v1031
    %v1033 = vmul.f32 %v1030, %v1032
    %v1034 = vadd.f32 %v1030, %v1033
    %vm1035 = vweird.f32 %v933
    %vm1036 = vweird.f32 %v1030
    %vm1037 = vmor %vm1035, %vm1036
    %v1038 = vsel %vm1037, %v1030, %v1034
    %v1039 = vand.u32 2147483647, %v933
    %vm1040 = vcmp.eq.f32.partialorder %v1039, 8.507059e+37
    %v1041 = vand.u32 %v933, 2147483648
    %v1042 = vor.u32 1.1754944e-38, %v1041
    %v1043 = vsel %vm1040, %v1042, %v1038
    %v1044 = vmul.f32 %v884, %v1043
    %v1045 = vrcp.pop %v939
    %v1046 = vmul.f32 %v939, %v1045
    %v1047 = vsub.f32 1.0, %v1046
    %v1048 = vmul.f32 %v1045, %v1047
    %v1049 = vadd.f32 %v1045, %v1048
    %vm1050 = vweird.f32 %v939
    %vm1051 = vweird.f32 %v1045
    %vm1052 = vmor %vm1050, %vm1051
    %v1053 = vsel %vm1052, %v1045, %v1049
    %v1054 = vand.u32 2147483647, %v939
    %vm1055 = vcmp.eq.f32.partialorder %v1054, 8.507059e+37
    %v1056 = vand.u32 %v939, 2147483648
    %v1057 = vor.u32 1.1754944e-38, %v1056
    %v1058 = vsel %vm1055, %v1057, %v1053
    %v1059 = vmul.f32 %v891, %v1058
    %1061 = vst.msk [vmem:[#allocation8] sm:$0xff] %vm162, %v661
    %v1070 = vsel %vm571, %v969, %v954
    %v1071 = vsel %vm573, %v984, %v1070
    %v1072 = vsel %vm575, %v999, %v1071
    %v1073 = vsel %vm577, %v1014, %v1072
    %v1074 = vsel %vm579, %v1029, %v1073
    %v1075 = vsel %vm581, %v1044, %v1074
    %v1076 = vsel %vm583, %v1059, %v1075
    %1077 = vrot.lane.b32.xlu0 %v1076, 32
    %v1078 = vpop.permute.xlu0 %1077
    %1080 = vst.msk [vmem:[#allocation8] sm:$0xff] %vm588, %v1078
    %v1081 = vld [vmem:[#allocation8] sm:$0xff]
    %v1083 = vsel %vm85, %v1081, 0
    %1085 = vmatpush.msra.mxu0 0.0
    %1086 = vmatpush.msra.mxu0 0.0
    %1087 = vmatpush.msra.mxu0 0.0
    %1088 = vmatpush.msra.mxu0 0.0
    %1089 = vmatpush.msra.mxu0 0.0
    %1090 = vmatpush.msra.mxu0 0.0
    %1091 = vmatpush.msra.mxu0 0.0
    %1092 = vmatpush.msra.mxu0 0.0
    %1093 = vmatpush.msra.mxu0 %v75
    %1094 = vmatpush.msra.mxu0 %v74
    %1095 = vmatpush.msra.mxu0 %v73
    %1096 = vmatpush.msra.mxu0 %v72
    %1097 = vmatpush.msra.mxu0 %v71
    %1098 = vmatpush.msra.mxu0 %v70
    %1099 = vmatpush.msra.mxu0 %v69
    %1100 = vmatpush.msra.mxu0 %v68
    %1101 = vmatmul.f32.gmra.mxu0 %v1083
    %v1102 = vpop.f32.mrf.mxu0
    %v1103 = vadd.f32 %v89, %v1102
    %1104 = vdwg.mxu0
    %v1105 = vxor.u32 %v1103, 2147483648
    %v1106 = vmul.f32 %v1105, 1.442695
    %v1107 = vpow.pop %v1106
    %v1108 = vadd.f32 %v1107, 1.0
    %v1109 = vrcp.pop %v1108
    %v1110 = vmul.f32 %v1108, %v1109
    %v1111 = vsub.f32 1.0, %v1110
    %v1112 = vmul.f32 %v1109, %v1111
    %v1113 = vadd.f32 %v1109, %v1112
    %vm1114 = vweird.f32 %v1108
    %vm1115 = vweird.f32 %v1109
    %vm1116 = vmor %vm1114, %vm1115
    %v1117 = vsel %vm1116, %v1109, %v1113
    %v1118 = vand.u32 2147483647, %v1108
    %vm1119 = vcmp.eq.f32.partialorder %v1118, 8.507059e+37
    %v1120 = vand.u32 %v1108, 2147483648
    %v1121 = vor.u32 1.1754944e-38, %v1120
    %v1122 = vsel %vm1119, %v1121, %v1117
    %v1123 = vmul.f32 1.0, %v1122
    %v1124 = vtanh.pop %v1103
    %v1125 = vmul.f32 %v1123, %v644
    %1127 = vrot.lane.b32.xlu0 %v1124, 64
    %v1128 = vpop.permute.xlu0 %1127
    %v1130 = vmul.f32 %v1123, %v1128
    %1132 = vrot.lane.b32.xlu0 %v1130, 96
    %v1133 = vpop.permute.xlu0 %1132
    %v1135 = vadd.f32 %v1125, %v1133
    %v1136 = vtanh.pop %v1135
    %1138 = vrot.lane.b32.xlu0 %v1136, 64
    %v1139 = vpop.permute.xlu0 %1138
    %v1141 = vmul.f32 %v1123, %v1139
    %v1142 = vld [vmem:[#allocation2] sm:$0xff]
    %v1143 = vld [vmem:[#allocation2 + $0x8] sm:$0xff]
    %v1144 = vld [vmem:[#allocation2 + $0x10] sm:$0xff]
    %v1145 = vld [vmem:[#allocation2 + $0x18] sm:$0xff]
    %v1146 = vld [vmem:[#allocation2 + $0x20] sm:$0xff]
    %v1147 = vld [vmem:[#allocation2 + $0x28] sm:$0xff]
    %v1148 = vld [vmem:[#allocation2 + $0x30] sm:$0xff]
    %v1149 = vld [vmem:[#allocation2 + $0x38] sm:$0xff]
    %1151 = vrot.lane.b32.xlu0 %v1141, 64
    %v1152 = vpop.permute.xlu0 %1151
    %v1153 = vsel %vm162, %v1152, 0
    %1155 = vmatpush.msra.mxu0 0.0
    %1156 = vmatpush.msra.mxu0 0.0
    %1157 = vmatpush.msra.mxu0 0.0
    %1158 = vmatpush.msra.mxu0 0.0
    %1159 = vmatpush.msra.mxu0 0.0
    %1160 = vmatpush.msra.mxu0 0.0
    %1161 = vmatpush.msra.mxu0 0.0
    %1162 = vmatpush.msra.mxu0 0.0
    %1163 = vmatpush.msra.mxu0 0.0
    %1164 = vmatpush.msra.mxu0 0.0
    %1165 = vmatpush.msra.mxu0 0.0
    %1166 = vmatpush.msra.mxu0 0.0
    %1167 = vmatpush.msra.mxu0 %v80
    %1168 = vmatpush.msra.mxu0 %v79
    %1169 = vmatpush.msra.mxu0 %v78
    %1170 = vmatpush.msra.mxu0 %v77
    %1171 = vmatmul.f32.gmra.mxu0 %v1153
    %v1172 = vpop.f32.mrf.mxu0
    %v1173 = vadd.f32 0.0, %v1172
    %1174 = vdwg.mxu0
    %v1176 = vrot.slane %v1173, 1
    %v1177 = vrot.slane %v1173, 2
    %v1178 = vrot.slane %v1173, 3
    %v1179 = vrot.slane %v1173, 4
    %v1180 = vrot.slane %v1173, 5
    %v1181 = vrot.slane %v1173, 6
    %v1182 = vrot.slane %v1173, 7
    %v1183 = vperm.slane %v1173, 0
    %v1184 = vperm.slane %v1176, 0
    %v1185 = vperm.slane %v1177, 0
    %v1186 = vperm.slane %v1178, 0
    %v1187 = vperm.slane %v1179, 0
    %v1188 = vperm.slane %v1180, 0
    %v1189 = vperm.slane %v1181, 0
    %v1190 = vperm.slane %v1182, 0
    %v1199 = vadd.f32 %v1183, %v1142
    %v1200 = vadd.f32 %v1184, %v1143
    %v1201 = vadd.f32 %v1185, %v1144
    %v1202 = vadd.f32 %v1186, %v1145
    %v1203 = vadd.f32 %v1187, %v1146
    %v1204 = vadd.f32 %v1188, %v1147
    %v1205 = vadd.f32 %v1189, %v1148
    %v1206 = vadd.f32 %v1190, %v1149
    %v1207 = vtanh.pop %v1199
    %v1208 = vtanh.pop %v1200
    %v1209 = vtanh.pop %v1201
    %v1210 = vtanh.pop %v1202
    %v1211 = vtanh.pop %v1203
    %v1212 = vtanh.pop %v1204
    %v1213 = vtanh.pop %v1205
    %v1214 = vtanh.pop %v1206
    %v1215 = vmul.f32 %v1207, %v83
    %v1216 = vmul.f32 %v1208, %v83
    %v1217 = vmul.f32 %v1209, %v83
    %v1218 = vmul.f32 %v1210, %v83
    %v1219 = vmul.f32 %v1211, %v83
    %v1220 = vmul.f32 %v1212, %v83
    %v1221 = vmul.f32 %v1213, %v83
    %v1222 = vmul.f32 %v1214, %v83
    %v1223 = vsel %vm162, %v1215, 0.0
    %1224 = vadd.xlane.f32.xlu0 %v1223
    %v1225 = vpop.xlane.xlu0 %1224
    %v1226 = vsel %vm162, %v1216, 0.0
    %1227 = vadd.xlane.f32.xlu0 %v1226
    %v1228 = vpop.xlane.xlu0 %1227
    %v1229 = vsel %vm162, %v1217, 0.0
    %1230 = vadd.xlane.f32.xlu0 %v1229
    %v1231 = vpop.xlane.xlu0 %1230
    %v1232 = vsel %vm162, %v1218, 0.0
    %1233 = vadd.xlane.f32.xlu0 %v1232
    %v1234 = vpop.xlane.xlu0 %1233
    %v1235 = vsel %vm162, %v1219, 0.0
    %1236 = vadd.xlane.f32.xlu0 %v1235
    %v1237 = vpop.xlane.xlu0 %1236
    %v1238 = vsel %vm162, %v1220, 0.0
    %1239 = vadd.xlane.f32.xlu0 %v1238
    %v1240 = vpop.xlane.xlu0 %1239
    %v1241 = vsel %vm162, %v1221, 0.0
    %1242 = vadd.xlane.f32.xlu0 %v1241
    %v1243 = vpop.xlane.xlu0 %1242
    %v1244 = vsel %vm162, %v1222, 0.0
    %1245 = vadd.xlane.f32.xlu0 %v1244
    %v1246 = vpop.xlane.xlu0 %1245
    %v1247 = vrot.slane %v1225, 4
    %v1248 = vmax.f32 %v1225, %v1247
    %v1249 = vrot.slane %v1248, 2
    %v1250 = vmax.f32 %v1248, %v1249
    %v1251 = vrot.slane %v1250, 1
    %v1252 = vmax.f32 %v1250, %v1251
    %v1253 = vrot.slane %v1228, 4
    %v1254 = vmax.f32 %v1228, %v1253
    %v1255 = vrot.slane %v1254, 2
    %v1256 = vmax.f32 %v1254, %v1255
    %v1257 = vrot.slane %v1256, 1
    %v1258 = vmax.f32 %v1256, %v1257
    %v1259 = vrot.slane %v1231, 4
    %v1260 = vmax.f32 %v1231, %v1259
    %v1261 = vrot.slane %v1260, 2
    %v1262 = vmax.f32 %v1260, %v1261
    %v1263 = vrot.slane %v1262, 1
    %v1264 = vmax.f32 %v1262, %v1263
    %v1265 = vrot.slane %v1234, 4
    %v1266 = vmax.f32 %v1234, %v1265
    %v1267 = vrot.slane %v1266, 2
    %v1268 = vmax.f32 %v1266, %v1267
    %v1269 = vrot.slane %v1268, 1
    %v1270 = vmax.f32 %v1268, %v1269
    %v1271 = vrot.slane %v1237, 4
    %v1272 = vmax.f32 %v1237, %v1271
    %v1273 = vrot.slane %v1272, 2
    %v1274 = vmax.f32 %v1272, %v1273
    %v1275 = vrot.slane %v1274, 1
    %v1276 = vmax.f32 %v1274, %v1275
    %v1277 = vrot.slane %v1240, 4
    %v1278 = vmax.f32 %v1240, %v1277
    %v1279 = vrot.slane %v1278, 2
    %v1280 = vmax.f32 %v1278, %v1279
    %v1281 = vrot.slane %v1280, 1
    %v1282 = vmax.f32 %v1280, %v1281
    %v1283 = vrot.slane %v1243, 4
    %v1284 = vmax.f32 %v1243, %v1283
    %v1285 = vrot.slane %v1284, 2
    %v1286 = vmax.f32 %v1284, %v1285
    %v1287 = vrot.slane %v1286, 1
    %v1288 = vmax.f32 %v1286, %v1287
    %v1289 = vrot.slane %v1246, 4
    %v1290 = vmax.f32 %v1246, %v1289
    %v1291 = vrot.slane %v1290, 2
    %v1292 = vmax.f32 %v1290, %v1291
    %v1293 = vrot.slane %v1292, 1
    %v1294 = vmax.f32 %v1292, %v1293
    %v1295 = vsub.f32 %v1225, %v1252
    %v1296 = vsub.f32 %v1228, %v1258
    %v1297 = vsub.f32 %v1231, %v1264
    %v1298 = vsub.f32 %v1234, %v1270
    %v1299 = vsub.f32 %v1237, %v1276
    %v1300 = vsub.f32 %v1240, %v1282
    %v1301 = vsub.f32 %v1243, %v1288
    %v1302 = vsub.f32 %v1246, %v1294
    %v1303 = vmul.f32 %v1295, 1.442695
    %v1304 = vpow.pop %v1303
    %v1305 = vmul.f32 %v1296, 1.442695
    %v1306 = vpow.pop %v1305
    %v1307 = vmul.f32 %v1297, 1.442695
    %v1308 = vpow.pop %v1307
    %v1309 = vmul.f32 %v1298, 1.442695
    %v1310 = vpow.pop %v1309
    %v1311 = vmul.f32 %v1299, 1.442695
    %v1312 = vpow.pop %v1311
    %v1313 = vmul.f32 %v1300, 1.442695
    %v1314 = vpow.pop %v1313
    %v1315 = vmul.f32 %v1301, 1.442695
    %v1316 = vpow.pop %v1315
    %v1317 = vmul.f32 %v1302, 1.442695
    %v1318 = vpow.pop %v1317
    %v1319 = vmul.f32 %v1142, %v1304
    %v1320 = vmul.f32 %v1143, %v1306
    %v1321 = vmul.f32 %v1144, %v1308
    %v1322 = vmul.f32 %v1145, %v1310
    %v1323 = vmul.f32 %v1146, %v1312
    %v1324 = vmul.f32 %v1147, %v1314
    %v1325 = vmul.f32 %v1148, %v1316
    %v1326 = vmul.f32 %v1149, %v1318
    %v1327 = vsel %vm162, %v1319, 0.0
    %v1328 = vrot.slane %v1327, 4
    %v1329 = vadd.f32 %v1327, %v1328
    %v1330 = vrot.slane %v1329, 2
    %v1331 = vadd.f32 %v1329, %v1330
    %v1332 = vrot.slane %v1331, 1
    %v1333 = vadd.f32 %v1331, %v1332
    %v1334 = vsel %vm162, %v1320, 0.0
    %v1335 = vrot.slane %v1334, 4
    %v1336 = vadd.f32 %v1334, %v1335
    %v1337 = vrot.slane %v1336, 2
    %v1338 = vadd.f32 %v1336, %v1337
    %v1339 = vrot.slane %v1338, 1
    %v1340 = vadd.f32 %v1338, %v1339
    %v1341 = vsel %vm162, %v1321, 0.0
    %v1342 = vrot.slane %v1341, 4
    %v1343 = vadd.f32 %v1341, %v1342
    %v1344 = vrot.slane %v1343, 2
    %v1345 = vadd.f32 %v1343, %v1344
    %v1346 = vrot.slane %v1345, 1
    %v1347 = vadd.f32 %v1345, %v1346
    %v1348 = vsel %vm162, %v1322, 0.0
    %v1349 = vrot.slane %v1348, 4
    %v1350 = vadd.f32 %v1348, %v1349
    %v1351 = vrot.slane %v1350, 2
    %v1352 = vadd.f32 %v1350, %v1351
    %v1353 = vrot.slane %v1352, 1
    %v1354 = vadd.f32 %v1352, %v1353
    %v1355 = vsel %vm162, %v1323, 0.0
    %v1356 = vrot.slane %v1355, 4
    %v1357 = vadd.f32 %v1355, %v1356
    %v1358 = vrot.slane %v1357, 2
    %v1359 = vadd.f32 %v1357, %v1358
    %v1360 = vrot.slane %v1359, 1
    %v1361 = vadd.f32 %v1359, %v1360
    %v1362 = vsel %vm162, %v1324, 0.0
    %v1363 = vrot.slane %v1362, 4
    %v1364 = vadd.f32 %v1362, %v1363
    %v1365 = vrot.slane %v1364, 2
    %v1366 = vadd.f32 %v1364, %v1365
    %v1367 = vrot.slane %v1366, 1
    %v1368 = vadd.f32 %v1366, %v1367
    %v1369 = vsel %vm162, %v1325, 0.0
    %v1370 = vrot.slane %v1369, 4
    %v1371 = vadd.f32 %v1369, %v1370
    %v1372 = vrot.slane %v1371, 2
    %v1373 = vadd.f32 %v1371, %v1372
    %v1374 = vrot.slane %v1373, 1
    %v1375 = vadd.f32 %v1373, %v1374
    %v1376 = vsel %vm162, %v1326, 0.0
    %v1377 = vrot.slane %v1376, 4
    %v1378 = vadd.f32 %v1376, %v1377
    %v1379 = vrot.slane %v1378, 2
    %v1380 = vadd.f32 %v1378, %v1379
    %v1381 = vrot.slane %v1380, 1
    %v1382 = vadd.f32 %v1380, %v1381
    %v1383 = vrot.slane %v1304, 4
    %v1384 = vadd.f32 %v1304, %v1383
    %v1385 = vrot.slane %v1384, 2
    %v1386 = vadd.f32 %v1384, %v1385
    %v1387 = vrot.slane %v1386, 1
    %v1388 = vadd.f32 %v1386, %v1387
    %v1389 = vrot.slane %v1306, 4
    %v1390 = vadd.f32 %v1306, %v1389
    %v1391 = vrot.slane %v1390, 2
    %v1392 = vadd.f32 %v1390, %v1391
    %v1393 = vrot.slane %v1392, 1
    %v1394 = vadd.f32 %v1392, %v1393
    %v1395 = vrot.slane %v1308, 4
    %v1396 = vadd.f32 %v1308, %v1395
    %v1397 = vrot.slane %v1396, 2
    %v1398 = vadd.f32 %v1396, %v1397
    %v1399 = vrot.slane %v1398, 1
    %v1400 = vadd.f32 %v1398, %v1399
    %v1401 = vrot.slane %v1310, 4
    %v1402 = vadd.f32 %v1310, %v1401
    %v1403 = vrot.slane %v1402, 2
    %v1404 = vadd.f32 %v1402, %v1403
    %v1405 = vrot.slane %v1404, 1
    %v1406 = vadd.f32 %v1404, %v1405
    %v1407 = vrot.slane %v1312, 4
    %v1408 = vadd.f32 %v1312, %v1407
    %v1409 = vrot.slane %v1408, 2
    %v1410 = vadd.f32 %v1408, %v1409
    %v1411 = vrot.slane %v1410, 1
    %v1412 = vadd.f32 %v1410, %v1411
    %v1413 = vrot.slane %v1314, 4
    %v1414 = vadd.f32 %v1314, %v1413
    %v1415 = vrot.slane %v1414, 2
    %v1416 = vadd.f32 %v1414, %v1415
    %v1417 = vrot.slane %v1416, 1
    %v1418 = vadd.f32 %v1416, %v1417
    %v1419 = vrot.slane %v1316, 4
    %v1420 = vadd.f32 %v1316, %v1419
    %v1421 = vrot.slane %v1420, 2
    %v1422 = vadd.f32 %v1420, %v1421
    %v1423 = vrot.slane %v1422, 1
    %v1424 = vadd.f32 %v1422, %v1423
    %v1425 = vrot.slane %v1318, 4
    %v1426 = vadd.f32 %v1318, %v1425
    %v1427 = vrot.slane %v1426, 2
    %v1428 = vadd.f32 %v1426, %v1427
    %v1429 = vrot.slane %v1428, 1
    %v1430 = vadd.f32 %v1428, %v1429
    %v1431 = vrcp.pop %v1388
    %v1432 = vmul.f32 %v1388, %v1431
    %v1433 = vsub.f32 1.0, %v1432
    %v1434 = vmul.f32 %v1431, %v1433
    %v1435 = vadd.f32 %v1431, %v1434
    %vm1436 = vweird.f32 %v1388
    %vm1437 = vweird.f32 %v1431
    %vm1438 = vmor %vm1436, %vm1437
    %v1439 = vsel %vm1438, %v1431, %v1435
    %v1440 = vand.u32 2147483647, %v1388
    %vm1441 = vcmp.eq.f32.partialorder %v1440, 8.507059e+37
    %v1442 = vand.u32 %v1388, 2147483648
    %v1443 = vor.u32 1.1754944e-38, %v1442
    %v1444 = vsel %vm1441, %v1443, %v1439
    %v1445 = vmul.f32 %v1333, %v1444
    %v1446 = vrcp.pop %v1394
    %v1447 = vmul.f32 %v1394, %v1446
    %v1448 = vsub.f32 1.0, %v1447
    %v1449 = vmul.f32 %v1446, %v1448
    %v1450 = vadd.f32 %v1446, %v1449
    %vm1451 = vweird.f32 %v1394
    %vm1452 = vweird.f32 %v1446
    %vm1453 = vmor %vm1451, %vm1452
    %v1454 = vsel %vm1453, %v1446, %v1450
    %v1455 = vand.u32 2147483647, %v1394
    %vm1456 = vcmp.eq.f32.partialorder %v1455, 8.507059e+37
    %v1457 = vand.u32 %v1394, 2147483648
    %v1458 = vor.u32 1.1754944e-38, %v1457
    %v1459 = vsel %vm1456, %v1458, %v1454
    %v1460 = vmul.f32 %v1340, %v1459
    %v1461 = vrcp.pop %v1400
    %v1462 = vmul.f32 %v1400, %v1461
    %v1463 = vsub.f32 1.0, %v1462
    %v1464 = vmul.f32 %v1461, %v1463
    %v1465 = vadd.f32 %v1461, %v1464
    %vm1466 = vweird.f32 %v1400
    %vm1467 = vweird.f32 %v1461
    %vm1468 = vmor %vm1466, %vm1467
    %v1469 = vsel %vm1468, %v1461, %v1465
    %v1470 = vand.u32 2147483647, %v1400
    %vm1471 = vcmp.eq.f32.partialorder %v1470, 8.507059e+37
    %v1472 = vand.u32 %v1400, 2147483648
    %v1473 = vor.u32 1.1754944e-38, %v1472
    %v1474 = vsel %vm1471, %v1473, %v1469
    %v1475 = vmul.f32 %v1347, %v1474
    %v1476 = vrcp.pop %v1406
    %v1477 = vmul.f32 %v1406, %v1476
    %v1478 = vsub.f32 1.0, %v1477
    %v1479 = vmul.f32 %v1476, %v1478
    %v1480 = vadd.f32 %v1476, %v1479
    %vm1481 = vweird.f32 %v1406
    %vm1482 = vweird.f32 %v1476
    %vm1483 = vmor %vm1481, %vm1482
    %v1484 = vsel %vm1483, %v1476, %v1480
    %v1485 = vand.u32 2147483647, %v1406
    %vm1486 = vcmp.eq.f32.partialorder %v1485, 8.507059e+37
    %v1487 = vand.u32 %v1406, 2147483648
    %v1488 = vor.u32 1.1754944e-38, %v1487
    %v1489 = vsel %vm1486, %v1488, %v1484
    %v1490 = vmul.f32 %v1354, %v1489
    %v1491 = vrcp.pop %v1412
    %v1492 = vmul.f32 %v1412, %v1491
    %v1493 = vsub.f32 1.0, %v1492
    %v1494 = vmul.f32 %v1491, %v1493
    %v1495 = vadd.f32 %v1491, %v1494
    %vm1496 = vweird.f32 %v1412
    %vm1497 = vweird.f32 %v1491
    %vm1498 = vmor %vm1496, %vm1497
    %v1499 = vsel %vm1498, %v1491, %v1495
    %v1500 = vand.u32 2147483647, %v1412
    %vm1501 = vcmp.eq.f32.partialorder %v1500, 8.507059e+37
    %v1502 = vand.u32 %v1412, 2147483648
    %v1503 = vor.u32 1.1754944e-38, %v1502
    %v1504 = vsel %vm1501, %v1503, %v1499
    %v1505 = vmul.f32 %v1361, %v1504
    %v1506 = vrcp.pop %v1418
    %v1507 = vmul.f32 %v1418, %v1506
    %v1508 = vsub.f32 1.0, %v1507
    %v1509 = vmul.f32 %v1506, %v1508
    %v1510 = vadd.f32 %v1506, %v1509
    %vm1511 = vweird.f32 %v1418
    %vm1512 = vweird.f32 %v1506
    %vm1513 = vmor %vm1511, %vm1512
    %v1514 = vsel %vm1513, %v1506, %v1510
    %v1515 = vand.u32 2147483647, %v1418
    %vm1516 = vcmp.eq.f32.partialorder %v1515, 8.507059e+37
    %v1517 = vand.u32 %v1418, 2147483648
    %v1518 = vor.u32 1.1754944e-38, %v1517
    %v1519 = vsel %vm1516, %v1518, %v1514
    %v1520 = vmul.f32 %v1368, %v1519
    %v1521 = vrcp.pop %v1424
    %v1522 = vmul.f32 %v1424, %v1521
    %v1523 = vsub.f32 1.0, %v1522
    %v1524 = vmul.f32 %v1521, %v1523
    %v1525 = vadd.f32 %v1521, %v1524
    %vm1526 = vweird.f32 %v1424
    %vm1527 = vweird.f32 %v1521
    %vm1528 = vmor %vm1526, %vm1527
    %v1529 = vsel %vm1528, %v1521, %v1525
    %v1530 = vand.u32 2147483647, %v1424
    %vm1531 = vcmp.eq.f32.partialorder %v1530, 8.507059e+37
    %v1532 = vand.u32 %v1424, 2147483648
    %v1533 = vor.u32 1.1754944e-38, %v1532
    %v1534 = vsel %vm1531, %v1533, %v1529
    %v1535 = vmul.f32 %v1375, %v1534
    %v1536 = vrcp.pop %v1430
    %v1537 = vmul.f32 %v1430, %v1536
    %v1538 = vsub.f32 1.0, %v1537
    %v1539 = vmul.f32 %v1536, %v1538
    %v1540 = vadd.f32 %v1536, %v1539
    %vm1541 = vweird.f32 %v1430
    %vm1542 = vweird.f32 %v1536
    %vm1543 = vmor %vm1541, %vm1542
    %v1544 = vsel %vm1543, %v1536, %v1540
    %v1545 = vand.u32 2147483647, %v1430
    %vm1546 = vcmp.eq.f32.partialorder %v1545, 8.507059e+37
    %v1547 = vand.u32 %v1430, 2147483648
    %v1548 = vor.u32 1.1754944e-38, %v1547
    %v1549 = vsel %vm1546, %v1548, %v1544
    %v1550 = vmul.f32 %v1382, %v1549
    %1552 = vst.msk [vmem:[#allocation8] sm:$0xff] %vm162, %v1152
    %v1561 = vsel %vm571, %v1460, %v1445
    %v1562 = vsel %vm573, %v1475, %v1561
    %v1563 = vsel %vm575, %v1490, %v1562
    %v1564 = vsel %vm577, %v1505, %v1563
    %v1565 = vsel %vm579, %v1520, %v1564
    %v1566 = vsel %vm581, %v1535, %v1565
    %v1567 = vsel %vm583, %v1550, %v1566
    %1568 = vrot.lane.b32.xlu0 %v1567, 32
    %v1569 = vpop.permute.xlu0 %1568
    %1571 = vst.msk [vmem:[#allocation8] sm:$0xff] %vm588, %v1569
    // Predicated region
    $region34: #{tpu_custom_call.1} parent=1 // pred_check
      _
    $region35: #{tpu_custom_call.1} parent=1 // pred_check_branch
      %1573 = sbr.rel (0) target = $region37
    $region36: #{tpu_custom_call.1} parent=1 // pred_region
      %1575 = vsyncadd [#allocation4], 0
      %s1577 = sshll.u32 [#allocation8], 4
      %s1578 = int_to_ptr.vmem [resolvable:$true] %s1577
      %s1579 = sshll.u32 %s5, 4
      %s1580 = int_to_ptr.hbm [resolvable:$true] %s1579
      %1582 = dma.vmem_to_hbm [thread:$0]  %s1578, 128, %s1580, [#allocation4]
    $region37: #{tpu_custom_call.1} parent=1 // pred_fallthru
      _
    // Predicated region
    $region38: #{tpu_custom_call.1} parent=1 // pred_check
      _
    $region39: #{tpu_custom_call.1} parent=1 // pred_check_branch
      %1584 = sbr.rel (0) target = $region41
    $region40: #{tpu_custom_call.1} parent=1 // pred_region
      %1586 = dma.done [#allocation4], 128
    $region41: #{tpu_custom_call.1} parent=1 // pred_fallthru
      _
    %1587 = vsyncpa [#allocation3], 1
    %1588 = vsyncpa [#allocation6], 1
    %1589 = vsyncpa [#allocation4], 1

</llo_original>
